<compile_context>
chip_gen: v5e
topology: v5e:2x2
jax: 0.10.0
libtpu: 0.0.40
codegen_flags: <defaults>
</compile_context>

<pallas_src>
import math

import jax
import jax.numpy as jnp
import numpy as np
from jax import lax
from jax.experimental import pallas as pl
from jax.experimental.pallas import tpu as pltpu

HW_CHUNK = 3
BN_EPS = 1e-5


def round_up(x, m):
    return -(-x // m) * m


def chunk_bounds(n, chunks):
    """Static chunk boundaries matching torch.chunk semantics."""
    size = -(-n // chunks)  # ceil
    bounds, s = [], 0
    while s < n:
        e = min(s + size, n)
        bounds.append((s, e))
        s = e
    return bounds


def make_spatial_encoder_kernel(H, W, h_bounds, w_bounds):
    def kernel(x_hw_ref, x_hc_ref, x_wc_ref, wh_ref, ww_ref, bn_ref,
               ah_ref, aw_ref):
        # Native-dtype tiles (no upfront full-tile f32 cast; bf16 streams as bf16).
        x_hw = x_hw_ref[...]   # (NB, H, W)
        x_hc = x_hc_ref[...]   # (NB, H, C)
        x_wc = x_wc_ref[...]   # (NB, W, C)
        nb = x_hw.shape[0]

        # Conv1d(5 -> 1, k=3, pad=1, no bias), by linearity:
        #   out[n, i] = sum_c sum_k feat_c[n, i+k-1] * w[c, k]   (zero-padded ends)
        # Pooled features are generated lazily and accumulated straight into the
        # three tap accumulators (only 1 pooled feature live at a time).
        def run_branch(feature_fns, w_ref, L):
            # Hoist all 15 conv-weight scalar reads out of the unrolled loop.
            wts = [[w_ref[c, k] for k in range(3)] for c in range(5)]
            t_prev = jnp.zeros((nb, L), jnp.float32)   # k=0 tap (uses feat[i-1])
            t_mid = jnp.zeros((nb, L), jnp.float32)    # k=1 tap (uses feat[i])
            t_next = jnp.zeros((nb, L), jnp.float32)   # k=2 tap (uses feat[i+1])
            for c, fn in enumerate(feature_fns):
                f = fn()                               # (NB, L) f32
                t_prev = t_prev + f * wts[c][0]
                t_mid = t_mid + f * wts[c][1]
                t_next = t_next + f * wts[c][2]
            # Shift the k=0 / k=2 taps with XLU rolls + boundary masks (no pad copies).
            idx = lax.broadcasted_iota(jnp.int32, (1, L), 1)
            out = t_mid
            out = out + jnp.where(idx >= 1,
                                  pltpu.roll(t_prev, shift=1, axis=1), 0.0)
            out = out + jnp.where(idx <= L - 2,
                                  pltpu.roll(t_next, shift=L - 1, axis=1), 0.0)
            return out

        # h-branch features (order matches torch.cat(x_hc_cpool + x_hw_wpool, dim=3)):
        #   [mean_c(x_hc), max_c(x_hc), mean over W-chunk0/1/2 of x_hw]
        h_feats = [
            lambda: jnp.mean(x_hc, axis=2, dtype=jnp.float32),
            lambda: jnp.max(x_hc, axis=2).astype(jnp.float32),
        ] + [
            (lambda s=s, e=e: jnp.mean(x_hw[:, :, s:e], axis=2, dtype=jnp.float32))
            for (s, e) in w_bounds
        ]

        # w-branch features (order matches torch.cat(x_wc_cpool + x_hw_hpool, dim=2)):
        #   [mean_c(x_wc), max_c(x_wc), mean over H-chunk0/1/2 of x_hw]
        w_feats = [
            lambda: jnp.mean(x_wc, axis=2, dtype=jnp.float32),
            lambda: jnp.max(x_wc, axis=2).astype(jnp.float32),
        ] + [
            (lambda s=s, e=e: jnp.mean(x_hw[:, s:e, :], axis=1, dtype=jnp.float32))
            for (s, e) in h_bounds
        ]

        out_h = run_branch(h_feats, wh_ref, H)   # (NB, H)
        out_w = run_branch(w_feats, ww_ref, W)   # (NB, W)

        # Folded eval-mode BatchNorm (scale/bias from SMEM) + sigmoid.
        ah_ref[...] = jax.nn.sigmoid(out_h * bn_ref[0, 0] + bn_ref[0, 1])
        aw_ref[...] = jax.nn.sigmoid(out_w * bn_ref[1, 0] + bn_ref[1, 1])

    return kernel


def _vmem_limit_bytes():
    """~half of physical VMEM, capped at 48 MiB (=> ~32 MiB on v7x, 48 MiB on v5e/v6e)."""
    cap = None
    try:
        info = pltpu.get_tpu_info()
        cap = getattr(info, "vmem_capacity_bytes", None)
    except Exception:
        cap = None
    if cap is None:
        cap = 64 * 1024 * 1024   # conservative fallback: v7x per-TC VMEM
    return int(min(cap // 2, 48 * 1024 * 1024))


def choose_batch_block(N, H, W, C, itemsize, vmem_limit):
    """Per-step sample batch sized against the *padded* VMEM footprint, capped by
    DMA amortization and by ceil(N/2) so >=2 blocks exist for v7x megacore."""
    if N <= 8:
        return N   # single block; block dims equal full dims (no alignment issue)

    LANE = 128
    sub = 8 if itemsize >= 4 else (16 if itemsize == 2 else 32)

    # Input blocks in VMEM are (8,128)-tiled on their last two dims.
    in_bytes = itemsize * (round_up(H, sub) * round_up(W, LANE)
                           + round_up(H, sub) * round_up(C, LANE)
                           + round_up(W, sub) * round_up(C, LANE))
    # Output blocks: (nb, H) / (nb, W) f32, lane-padded.
    out_bytes = 4 * (round_up(H, LANE) + round_up(W, LANE))
    # In-kernel f32 temporaries: ~4 live (nb, L) arrays per branch (3 taps + feature).
    tmp_bytes = 4 * 4 * (round_up(H, LANE) + round_up(W, LANE))
    per_sample = 2 * (in_bytes + out_bytes) + tmp_bytes   # x2 = double buffering

    budget = vmem_limit // 2                              # headroom for internal scratch
    nb_vmem = max(1, budget // max(per_sample, 1))

    # DMA amortization: ~4 MiB of real HBM traffic per grid step is plenty.
    hbm_per_sample = itemsize * (H * W + H * C + W * C)
    nb_dma = max(1, (4 << 20) // max(hbm_per_sample, 1))

    # Keep >=2 grid steps so both v7x TensorCores get work on the "parallel" axis.
    nb_mc = -(-N // 2)

    nb = min(nb_vmem, nb_dma, nb_mc)
    if nb >= N:
        return N
    return max(8, (nb // 8) * 8)   # keep output second-to-last dim 8-aligned


def spatial_encoder_pallas(x_hw, x_hc, x_wc, wh, ww, bn_h, bn_w):
    """x_hw:(N,1,H,W) x_hc:(N,1,H,C) x_wc:(N,1,W,C); wh/ww:(1,5,3); bn_*: (4,)."""
    N, _, H, W = x_hw.shape
    C = x_hc.shape[3]
    assert x_wc.shape == (N, 1, W, C)

    h_bounds = chunk_bounds(H, HW_CHUNK)
    w_bounds = chunk_bounds(W, HW_CHUNK)
    # The module needs exactly 3 chunks per spatial dim (5-channel conv input).
    assert len(h_bounds) == HW_CHUNK and len(w_bounds) == HW_CHUNK, \
        "H and W must be large enough to produce 3 chunks"

    x_hw3 = x_hw[:, 0]               # (N, H, W)   -- no HBM transposes, no padding
    x_hc3 = x_hc[:, 0]               # (N, H, C)
    x_wc3 = x_wc[:, 0]               # (N, W, C)

    vmem_limit = _vmem_limit_bytes()
    nb = choose_batch_block(N, H, W, C, x_hw3.dtype.itemsize, vmem_limit)
    grid = (pl.cdiv(N, nb),)         # ragged last block handled by Pallas clamping

    wh2 = wh[0].astype(jnp.float32)  # (5, 3)
    ww2 = ww[0].astype(jnp.float32)  # (5, 3)

    # Fold eval-mode BN ([gamma, beta, mean, var]) into per-branch scale/bias.
    def fold(p):
        p = p.astype(jnp.float32)
        scale = p[0] * lax.rsqrt(p[3] + BN_EPS)
        return jnp.stack([scale, p[1] - p[2] * scale])
    bn = jnp.stack([fold(bn_h), fold(bn_w)], axis=0)   # (2, 2)

    kernel = make_spatial_encoder_kernel(H, W, h_bounds, w_bounds)
    smem_spec = pl.BlockSpec(memory_space=pltpu.MemorySpace.SMEM)

    a_h, a_w = pl.pallas_call(
        kernel,
        out_shape=(jax.ShapeDtypeStruct((N, H), jnp.float32),
                   jax.ShapeDtypeStruct((N, W), jnp.float32)),
        grid=grid,
        in_specs=[
            pl.BlockSpec((nb, H, W), lambda b: (b, 0, 0)),
            pl.BlockSpec((nb, H, C), lambda b: (b, 0, 0)),
            pl.BlockSpec((nb, W, C), lambda b: (b, 0, 0)),
            smem_spec,   # wh (5,3)
            smem_spec,   # ww (5,3)
            smem_spec,   # bn (2,2) folded scale/bias
        ],
        out_specs=(
            pl.BlockSpec((nb, H), lambda b: (b, 0)),
            pl.BlockSpec((nb, W), lambda b: (b, 0)),
        ),
        compiler_params=pltpu.CompilerParams(
            dimension_semantics=("parallel",),
            vmem_limit_bytes=vmem_limit),
    )(x_hw3, x_hc3, x_wc3, wh2, ww2, bn)

    # Lane-dense kernel outputs -> module output layout (wrapper-side plumbing).
    return a_h[:, None, :, None], a_w[:, None, None, :]   # (N,1,H,1), (N,1,1,W)


def spatial_encoder_reference(x_hw, x_hc, x_wc, wh, ww, bn_h, bn_w):
    """Pure-JAX mirror of the PyTorch forward (eval-mode BN)."""
    N, _, H, W = x_hw.shape
    hb = chunk_bounds(H, HW_CHUNK)
    wb = chunk_bounds(W, HW_CHUNK)

    x_hw_hpool = jnp.concatenate(
        [x_hw[:, :, s:e, :].mean(axis=2, keepdims=True) for s, e in hb], axis=2)
    x_hw_wpool = jnp.concatenate(
        [x_hw[:, :, :, s:e].mean(axis=3, keepdims=True) for s, e in wb], axis=3)
    x_hc_cpool = [x_hc.mean(axis=3, keepdims=True), x_hc.max(axis=3, keepdims=True)]
    x_wc_cpool = [jnp.swapaxes(x_wc.mean(axis=3, keepdims=True), 2, 3),
                  jnp.swapaxes(x_wc.max(axis=3, keepdims=True), 2, 3)]

    h = jnp.concatenate(x_hc_cpool + [x_hw_wpool], axis=3)   # (N,1,H,5)
    w = jnp.concatenate(x_wc_cpool + [x_hw_hpool], axis=2)   # (N,1,5,W)

    h = jnp.transpose(h[:, 0], (0, 2, 1))                    # (N,5,H)
    w = w[:, 0]                                              # (N,5,W)

    conv1d = lambda x, wt: lax.conv_general_dilated(
        x, wt, window_strides=(1,), padding=((1, 1),),
        dimension_numbers=('NCH', 'OIH', 'NCH'))

    h = conv1d(h, wh)[:, :, :, None]                         # (N,1,H,1)
    w = conv1d(w, ww)[:, :, None, :]                         # (N,1,1,W)

    def bn_apply(x, p):
        g, b, m, v = p[0], p[1], p[2], p[3]
        return (x - m) * lax.rsqrt(v + BN_EPS) * g + b

    return jax.nn.sigmoid(bn_apply(h, bn_h)), jax.nn.sigmoid(bn_apply(w, bn_w))


if __name__ == "__main__":
    N, H, W, C = 2, 16, 16, 8
    key = jax.random.PRNGKey(0)
    k1, k2, k3, k4, k5 = jax.random.split(key, 5)

    x_hw = jax.random.normal(k1, (N, 1, H, W), jnp.float32)
    x_hc = jax.random.normal(k2, (N, 1, H, C), jnp.float32)
    x_wc = jax.random.normal(k3, (N, 1, W, C), jnp.float32)

    # Conv1d(5, 1, kernel_size=3, padding=1, bias=False) -> weight (1, 5, 3)
    bound = 1.0 / math.sqrt(5 * 3)
    wh = jax.random.uniform(k4, (1, 5, 3), jnp.float32, -bound, bound)
    ww = jax.random.uniform(k5, (1, 5, 3), jnp.float32, -bound, bound)
    # BatchNorm2d(1) params: [gamma, beta, running_mean, running_var]
    bn_h = jnp.array([1.2, 0.1, 0.05, 0.9], jnp.float32)
    bn_w = jnp.array([0.8, -0.2, -0.03, 1.1], jnp.float32)

    a_h, a_w = spatial_encoder_pallas(x_hw, x_hc, x_wc, wh, ww, bn_h, bn_w)
    jax.block_until_ready((a_h, a_w))

    r_h, r_w = spatial_encoder_reference(x_hw, x_hc, x_wc, wh, ww, bn_h, bn_w)
    np.testing.assert_allclose(np.asarray(a_h), np.asarray(r_h), rtol=1e-5, atol=1e-5)
    np.testing.assert_allclose(np.asarray(a_w), np.asarray(r_w), rtol=1e-5, atol=1e-5)

    print("KERNEL_OK")
</pallas_src>

<mosaic_0001>
module attributes {stable_mosaic.version = 11 : i64} {
  func.func @kernel(%arg0: i32, %arg1: memref<2x16x16xf32, #tpu.memory_space<vmem>>, %arg2: memref<2x16x8xf32, #tpu.memory_space<vmem>>, %arg3: memref<2x16x8xf32, #tpu.memory_space<vmem>>, %arg4: memref<5x3xf32, #tpu.memory_space<smem>>, %arg5: memref<5x3xf32, #tpu.memory_space<smem>>, %arg6: memref<2x2xf32, #tpu.memory_space<smem>>, %arg7: memref<2x16xf32, #tpu.memory_space<vmem>>, %arg8: memref<2x16xf32, #tpu.memory_space<vmem>>) attributes {dimension_semantics = [#tpu.dimension_semantics<parallel>], iteration_bounds = array<i64: 1>, scalar_prefetch = 0 : i64, scratch_operands = 0 : i64, tpu.core_type = #tpu.core_type<tc>, window_params = [{transform_indices = @transform_0, window_bounds = array<i64: 2, 16, 16>}, {transform_indices = @transform_1, window_bounds = array<i64: 2, 16, 8>}, {transform_indices = @transform_2, window_bounds = array<i64: 2, 16, 8>}, {transform_indices = @transform_3, window_bounds = array<i64: 5, 3>}, {transform_indices = @transform_4, window_bounds = array<i64: 5, 3>}, {transform_indices = @transform_5, window_bounds = array<i64: 2, 2>}, {transform_indices = @transform_6, window_bounds = array<i64: 2, 16>}, {transform_indices = @transform_7, window_bounds = array<i64: 2, 16>}]} {
    %c0 = arith.constant 0 : index
    %c0_0 = arith.constant 0 : index
    %c0_1 = arith.constant 0 : index
    %0 = vector.load %arg1[%c0, %c0_0, %c0_1] : memref<2x16x16xf32, #tpu.memory_space<vmem>>, vector<2x16x16xf32>
    %c0_2 = arith.constant 0 : index
    %c0_3 = arith.constant 0 : index
    %c0_4 = arith.constant 0 : index
    %1 = vector.load %arg2[%c0_2, %c0_3, %c0_4] : memref<2x16x8xf32, #tpu.memory_space<vmem>>, vector<2x16x8xf32>
    %c0_5 = arith.constant 0 : index
    %c0_6 = arith.constant 0 : index
    %c0_7 = arith.constant 0 : index
    %2 = vector.load %arg3[%c0_5, %c0_6, %c0_7] : memref<2x16x8xf32, #tpu.memory_space<vmem>>, vector<2x16x8xf32>
    %c0_8 = arith.constant 0 : index
    %c0_9 = arith.constant 0 : index
    %3 = memref.load %arg4[%c0_8, %c0_9] : memref<5x3xf32, #tpu.memory_space<smem>>
    %c0_10 = arith.constant 0 : index
    %c1 = arith.constant 1 : index
    %4 = memref.load %arg4[%c0_10, %c1] : memref<5x3xf32, #tpu.memory_space<smem>>
    %c0_11 = arith.constant 0 : index
    %c2 = arith.constant 2 : index
    %5 = memref.load %arg4[%c0_11, %c2] : memref<5x3xf32, #tpu.memory_space<smem>>
    %c1_12 = arith.constant 1 : index
    %c0_13 = arith.constant 0 : index
    %6 = memref.load %arg4[%c1_12, %c0_13] : memref<5x3xf32, #tpu.memory_space<smem>>
    %c1_14 = arith.constant 1 : index
    %c1_15 = arith.constant 1 : index
    %7 = memref.load %arg4[%c1_14, %c1_15] : memref<5x3xf32, #tpu.memory_space<smem>>
    %c1_16 = arith.constant 1 : index
    %c2_17 = arith.constant 2 : index
    %8 = memref.load %arg4[%c1_16, %c2_17] : memref<5x3xf32, #tpu.memory_space<smem>>
    %c2_18 = arith.constant 2 : index
    %c0_19 = arith.constant 0 : index
    %9 = memref.load %arg4[%c2_18, %c0_19] : memref<5x3xf32, #tpu.memory_space<smem>>
    %c2_20 = arith.constant 2 : index
    %c1_21 = arith.constant 1 : index
    %10 = memref.load %arg4[%c2_20, %c1_21] : memref<5x3xf32, #tpu.memory_space<smem>>
    %c2_22 = arith.constant 2 : index
    %c2_23 = arith.constant 2 : index
    %11 = memref.load %arg4[%c2_22, %c2_23] : memref<5x3xf32, #tpu.memory_space<smem>>
    %c3 = arith.constant 3 : index
    %c0_24 = arith.constant 0 : index
    %12 = memref.load %arg4[%c3, %c0_24] : memref<5x3xf32, #tpu.memory_space<smem>>
    %c3_25 = arith.constant 3 : index
    %c1_26 = arith.constant 1 : index
    %13 = memref.load %arg4[%c3_25, %c1_26] : memref<5x3xf32, #tpu.memory_space<smem>>
    %c3_27 = arith.constant 3 : index
    %c2_28 = arith.constant 2 : index
    %14 = memref.load %arg4[%c3_27, %c2_28] : memref<5x3xf32, #tpu.memory_space<smem>>
    %c4 = arith.constant 4 : index
    %c0_29 = arith.constant 0 : index
    %15 = memref.load %arg4[%c4, %c0_29] : memref<5x3xf32, #tpu.memory_space<smem>>
    %c4_30 = arith.constant 4 : index
    %c1_31 = arith.constant 1 : index
    %16 = memref.load %arg4[%c4_30, %c1_31] : memref<5x3xf32, #tpu.memory_space<smem>>
    %c4_32 = arith.constant 4 : index
    %c2_33 = arith.constant 2 : index
    %17 = memref.load %arg4[%c4_32, %c2_33] : memref<5x3xf32, #tpu.memory_space<smem>>
    %cst = arith.constant 0.000000e+00 : f32
    %18 = vector.broadcast %cst : f32 to vector<2x16xf32>
    %cst_34 = arith.constant 0.000000e+00 : f32
    %19 = vector.broadcast %cst_34 : f32 to vector<2x16xf32>
    %cst_35 = arith.constant 0.000000e+00 : f32
    %20 = vector.broadcast %cst_35 : f32 to vector<2x16xf32>
    %cst_36 = arith.constant dense<0.000000e+00> : vector<2x16xf32>
    %21 = vector.multi_reduction <add>, %1, %cst_36 [2] : vector<2x16x8xf32> to vector<2x16xf32>
    %cst_37 = arith.constant 8.000000e+00 : f32
    %22 = vector.broadcast %cst_37 : f32 to vector<2x16xf32>
    %23 = arith.divf %21, %22 : vector<2x16xf32>
    %24 = vector.broadcast %3 : f32 to vector<2x16xf32>
    %25 = arith.mulf %23, %24 : vector<2x16xf32>
    %26 = arith.addf %18, %25 : vector<2x16xf32>
    %27 = vector.broadcast %4 : f32 to vector<2x16xf32>
    %28 = arith.mulf %23, %27 : vector<2x16xf32>
    %29 = arith.addf %19, %28 : vector<2x16xf32>
    %30 = vector.broadcast %5 : f32 to vector<2x16xf32>
    %31 = arith.mulf %23, %30 : vector<2x16xf32>
    %32 = arith.addf %20, %31 : vector<2x16xf32>
    %cst_38 = arith.constant dense<0xFF800000> : vector<2x16xf32>
    %33 = vector.multi_reduction <maximumf>, %1, %cst_38 [2] : vector<2x16x8xf32> to vector<2x16xf32>
    %34 = vector.broadcast %6 : f32 to vector<2x16xf32>
    %35 = arith.mulf %33, %34 : vector<2x16xf32>
    %36 = arith.addf %26, %35 : vector<2x16xf32>
    %37 = vector.broadcast %7 : f32 to vector<2x16xf32>
    %38 = arith.mulf %33, %37 : vector<2x16xf32>
    %39 = arith.addf %29, %38 : vector<2x16xf32>
    %40 = vector.broadcast %8 : f32 to vector<2x16xf32>
    %41 = arith.mulf %33, %40 : vector<2x16xf32>
    %42 = arith.addf %32, %41 : vector<2x16xf32>
    %43 = vector.extract_strided_slice %0 {offsets = [0, 0, 0], sizes = [2, 16, 6], strides = [1, 1, 1]} : vector<2x16x16xf32> to vector<2x16x6xf32>
    %cst_39 = arith.constant dense<0.000000e+00> : vector<2x16xf32>
    %44 = vector.multi_reduction <add>, %43, %cst_39 [2] : vector<2x16x6xf32> to vector<2x16xf32>
    %cst_40 = arith.constant 6.000000e+00 : f32
    %45 = vector.broadcast %cst_40 : f32 to vector<2x16xf32>
    %46 = arith.divf %44, %45 : vector<2x16xf32>
    %47 = vector.broadcast %9 : f32 to vector<2x16xf32>
    %48 = arith.mulf %46, %47 : vector<2x16xf32>
    %49 = arith.addf %36, %48 : vector<2x16xf32>
    %50 = vector.broadcast %10 : f32 to vector<2x16xf32>
    %51 = arith.mulf %46, %50 : vector<2x16xf32>
    %52 = arith.addf %39, %51 : vector<2x16xf32>
    %53 = vector.broadcast %11 : f32 to vector<2x16xf32>
    %54 = arith.mulf %46, %53 : vector<2x16xf32>
    %55 = arith.addf %42, %54 : vector<2x16xf32>
    %56 = vector.extract_strided_slice %0 {offsets = [0, 0, 6], sizes = [2, 16, 6], strides = [1, 1, 1]} : vector<2x16x16xf32> to vector<2x16x6xf32>
    %cst_41 = arith.constant dense<0.000000e+00> : vector<2x16xf32>
    %57 = vector.multi_reduction <add>, %56, %cst_41 [2] : vector<2x16x6xf32> to vector<2x16xf32>
    %cst_42 = arith.constant 6.000000e+00 : f32
    %58 = vector.broadcast %cst_42 : f32 to vector<2x16xf32>
    %59 = arith.divf %57, %58 : vector<2x16xf32>
    %60 = vector.broadcast %12 : f32 to vector<2x16xf32>
    %61 = arith.mulf %59, %60 : vector<2x16xf32>
    %62 = arith.addf %49, %61 : vector<2x16xf32>
    %63 = vector.broadcast %13 : f32 to vector<2x16xf32>
    %64 = arith.mulf %59, %63 : vector<2x16xf32>
    %65 = arith.addf %52, %64 : vector<2x16xf32>
    %66 = vector.broadcast %14 : f32 to vector<2x16xf32>
    %67 = arith.mulf %59, %66 : vector<2x16xf32>
    %68 = arith.addf %55, %67 : vector<2x16xf32>
    %69 = vector.extract_strided_slice %0 {offsets = [0, 0, 12], sizes = [2, 16, 4], strides = [1, 1, 1]} : vector<2x16x16xf32> to vector<2x16x4xf32>
    %cst_43 = arith.constant dense<0.000000e+00> : vector<2x16xf32>
    %70 = vector.multi_reduction <add>, %69, %cst_43 [2] : vector<2x16x4xf32> to vector<2x16xf32>
    %cst_44 = arith.constant 4.000000e+00 : f32
    %71 = vector.broadcast %cst_44 : f32 to vector<2x16xf32>
    %72 = arith.divf %70, %71 : vector<2x16xf32>
    %73 = vector.broadcast %15 : f32 to vector<2x16xf32>
    %74 = arith.mulf %72, %73 : vector<2x16xf32>
    %75 = arith.addf %62, %74 : vector<2x16xf32>
    %76 = vector.broadcast %16 : f32 to vector<2x16xf32>
    %77 = arith.mulf %72, %76 : vector<2x16xf32>
    %78 = arith.addf %65, %77 : vector<2x16xf32>
    %79 = vector.broadcast %17 : f32 to vector<2x16xf32>
    %80 = arith.mulf %72, %79 : vector<2x16xf32>
    %81 = arith.addf %68, %80 : vector<2x16xf32>
    %82 = tpu.iota {dimensions = array<i32: 1>} : vector<1x16xi32>
    %c1_i32 = arith.constant 1 : i32
    %83 = vector.broadcast %c1_i32 : i32 to vector<1x16xi32>
    %84 = arith.cmpi sge, %82, %83 : vector<1x16xi32>
    %c1_i32_45 = arith.constant 1 : i32
    %85 = tpu.dynamic_rotate %75 by %c1_i32_45 dim 1 : vector<2x16xf32>, i32 -> vector<2x16xf32>
    %cst_46 = arith.constant 0.000000e+00 : f32
    %86 = vector.shape_cast %84 : vector<1x16xi1> to vector<1x16xi1>
    %87 = vector.broadcast %86 : vector<1x16xi1> to vector<2x16xi1>
    %88 = vector.broadcast %cst_46 : f32 to vector<2x16xf32>
    %89 = arith.select %87, %85, %88 : vector<2x16xi1>, vector<2x16xf32>
    %90 = arith.addf %78, %89 : vector<2x16xf32>
    %c14_i32 = arith.constant 14 : i32
    %91 = vector.broadcast %c14_i32 : i32 to vector<1x16xi32>
    %92 = arith.cmpi sle, %82, %91 : vector<1x16xi32>
    %c15_i32 = arith.constant 15 : i32
    %93 = tpu.dynamic_rotate %81 by %c15_i32 dim 1 : vector<2x16xf32>, i32 -> vector<2x16xf32>
    %cst_47 = arith.constant 0.000000e+00 : f32
    %94 = vector.shape_cast %92 : vector<1x16xi1> to vector<1x16xi1>
    %95 = vector.broadcast %94 : vector<1x16xi1> to vector<2x16xi1>
    %96 = vector.broadcast %cst_47 : f32 to vector<2x16xf32>
    %97 = arith.select %95, %93, %96 : vector<2x16xi1>, vector<2x16xf32>
    %98 = arith.addf %90, %97 : vector<2x16xf32>
    %c0_48 = arith.constant 0 : index
    %c0_49 = arith.constant 0 : index
    %99 = memref.load %arg5[%c0_48, %c0_49] : memref<5x3xf32, #tpu.memory_space<smem>>
    %c0_50 = arith.constant 0 : index
    %c1_51 = arith.constant 1 : index
    %100 = memref.load %arg5[%c0_50, %c1_51] : memref<5x3xf32, #tpu.memory_space<smem>>
    %c0_52 = arith.constant 0 : index
    %c2_53 = arith.constant 2 : index
    %101 = memref.load %arg5[%c0_52, %c2_53] : memref<5x3xf32, #tpu.memory_space<smem>>
    %c1_54 = arith.constant 1 : index
    %c0_55 = arith.constant 0 : index
    %102 = memref.load %arg5[%c1_54, %c0_55] : memref<5x3xf32, #tpu.memory_space<smem>>
    %c1_56 = arith.constant 1 : index
    %c1_57 = arith.constant 1 : index
    %103 = memref.load %arg5[%c1_56, %c1_57] : memref<5x3xf32, #tpu.memory_space<smem>>
    %c1_58 = arith.constant 1 : index
    %c2_59 = arith.constant 2 : index
    %104 = memref.load %arg5[%c1_58, %c2_59] : memref<5x3xf32, #tpu.memory_space<smem>>
    %c2_60 = arith.constant 2 : index
    %c0_61 = arith.constant 0 : index
    %105 = memref.load %arg5[%c2_60, %c0_61] : memref<5x3xf32, #tpu.memory_space<smem>>
    %c2_62 = arith.constant 2 : index
    %c1_63 = arith.constant 1 : index
    %106 = memref.load %arg5[%c2_62, %c1_63] : memref<5x3xf32, #tpu.memory_space<smem>>
    %c2_64 = arith.constant 2 : index
    %c2_65 = arith.constant 2 : index
    %107 = memref.load %arg5[%c2_64, %c2_65] : memref<5x3xf32, #tpu.memory_space<smem>>
    %c3_66 = arith.constant 3 : index
    %c0_67 = arith.constant 0 : index
    %108 = memref.load %arg5[%c3_66, %c0_67] : memref<5x3xf32, #tpu.memory_space<smem>>
    %c3_68 = arith.constant 3 : index
    %c1_69 = arith.constant 1 : index
    %109 = memref.load %arg5[%c3_68, %c1_69] : memref<5x3xf32, #tpu.memory_space<smem>>
    %c3_70 = arith.constant 3 : index
    %c2_71 = arith.constant 2 : index
    %110 = memref.load %arg5[%c3_70, %c2_71] : memref<5x3xf32, #tpu.memory_space<smem>>
    %c4_72 = arith.constant 4 : index
    %c0_73 = arith.constant 0 : index
    %111 = memref.load %arg5[%c4_72, %c0_73] : memref<5x3xf32, #tpu.memory_space<smem>>
    %c4_74 = arith.constant 4 : index
    %c1_75 = arith.constant 1 : index
    %112 = memref.load %arg5[%c4_74, %c1_75] : memref<5x3xf32, #tpu.memory_space<smem>>
    %c4_76 = arith.constant 4 : index
    %c2_77 = arith.constant 2 : index
    %113 = memref.load %arg5[%c4_76, %c2_77] : memref<5x3xf32, #tpu.memory_space<smem>>
    %cst_78 = arith.constant 0.000000e+00 : f32
    %114 = vector.broadcast %cst_78 : f32 to vector<2x16xf32>
    %cst_79 = arith.constant 0.000000e+00 : f32
    %115 = vector.broadcast %cst_79 : f32 to vector<2x16xf32>
    %cst_80 = arith.constant 0.000000e+00 : f32
    %116 = vector.broadcast %cst_80 : f32 to vector<2x16xf32>
    %cst_81 = arith.constant dense<0.000000e+00> : vector<2x16xf32>
    %117 = vector.multi_reduction <add>, %2, %cst_81 [2] : vector<2x16x8xf32> to vector<2x16xf32>
    %cst_82 = arith.constant 8.000000e+00 : f32
    %118 = vector.broadcast %cst_82 : f32 to vector<2x16xf32>
    %119 = arith.divf %117, %118 : vector<2x16xf32>
    %120 = vector.broadcast %99 : f32 to vector<2x16xf32>
    %121 = arith.mulf %119, %120 : vector<2x16xf32>
    %122 = arith.addf %114, %121 : vector<2x16xf32>
    %123 = vector.broadcast %100 : f32 to vector<2x16xf32>
    %124 = arith.mulf %119, %123 : vector<2x16xf32>
    %125 = arith.addf %115, %124 : vector<2x16xf32>
    %126 = vector.broadcast %101 : f32 to vector<2x16xf32>
    %127 = arith.mulf %119, %126 : vector<2x16xf32>
    %128 = arith.addf %116, %127 : vector<2x16xf32>
    %cst_83 = arith.constant dense<0xFF800000> : vector<2x16xf32>
    %129 = vector.multi_reduction <maximumf>, %2, %cst_83 [2] : vector<2x16x8xf32> to vector<2x16xf32>
    %130 = vector.broadcast %102 : f32 to vector<2x16xf32>
    %131 = arith.mulf %129, %130 : vector<2x16xf32>
    %132 = arith.addf %122, %131 : vector<2x16xf32>
    %133 = vector.broadcast %103 : f32 to vector<2x16xf32>
    %134 = arith.mulf %129, %133 : vector<2x16xf32>
    %135 = arith.addf %125, %134 : vector<2x16xf32>
    %136 = vector.broadcast %104 : f32 to vector<2x16xf32>
    %137 = arith.mulf %129, %136 : vector<2x16xf32>
    %138 = arith.addf %128, %137 : vector<2x16xf32>
    %139 = vector.extract_strided_slice %0 {offsets = [0, 0, 0], sizes = [2, 6, 16], strides = [1, 1, 1]} : vector<2x16x16xf32> to vector<2x6x16xf32>
    %cst_84 = arith.constant dense<0.000000e+00> : vector<2x16xf32>
    %140 = vector.multi_reduction <add>, %139, %cst_84 [1] : vector<2x6x16xf32> to vector<2x16xf32>
    %cst_85 = arith.constant 6.000000e+00 : f32
    %141 = vector.broadcast %cst_85 : f32 to vector<2x16xf32>
    %142 = arith.divf %140, %141 : vector<2x16xf32>
    %143 = vector.broadcast %105 : f32 to vector<2x16xf32>
    %144 = arith.mulf %142, %143 : vector<2x16xf32>
    %145 = arith.addf %132, %144 : vector<2x16xf32>
    %146 = vector.broadcast %106 : f32 to vector<2x16xf32>
    %147 = arith.mulf %142, %146 : vector<2x16xf32>
    %148 = arith.addf %135, %147 : vector<2x16xf32>
    %149 = vector.broadcast %107 : f32 to vector<2x16xf32>
    %150 = arith.mulf %142, %149 : vector<2x16xf32>
    %151 = arith.addf %138, %150 : vector<2x16xf32>
    %152 = vector.extract_strided_slice %0 {offsets = [0, 6, 0], sizes = [2, 6, 16], strides = [1, 1, 1]} : vector<2x16x16xf32> to vector<2x6x16xf32>
    %cst_86 = arith.constant dense<0.000000e+00> : vector<2x16xf32>
    %153 = vector.multi_reduction <add>, %152, %cst_86 [1] : vector<2x6x16xf32> to vector<2x16xf32>
    %cst_87 = arith.constant 6.000000e+00 : f32
    %154 = vector.broadcast %cst_87 : f32 to vector<2x16xf32>
    %155 = arith.divf %153, %154 : vector<2x16xf32>
    %156 = vector.broadcast %108 : f32 to vector<2x16xf32>
    %157 = arith.mulf %155, %156 : vector<2x16xf32>
    %158 = arith.addf %145, %157 : vector<2x16xf32>
    %159 = vector.broadcast %109 : f32 to vector<2x16xf32>
    %160 = arith.mulf %155, %159 : vector<2x16xf32>
    %161 = arith.addf %148, %160 : vector<2x16xf32>
    %162 = vector.broadcast %110 : f32 to vector<2x16xf32>
    %163 = arith.mulf %155, %162 : vector<2x16xf32>
    %164 = arith.addf %151, %163 : vector<2x16xf32>
    %165 = vector.extract_strided_slice %0 {offsets = [0, 12, 0], sizes = [2, 4, 16], strides = [1, 1, 1]} : vector<2x16x16xf32> to vector<2x4x16xf32>
    %cst_88 = arith.constant dense<0.000000e+00> : vector<2x16xf32>
    %166 = vector.multi_reduction <add>, %165, %cst_88 [1] : vector<2x4x16xf32> to vector<2x16xf32>
    %cst_89 = arith.constant 4.000000e+00 : f32
    %167 = vector.broadcast %cst_89 : f32 to vector<2x16xf32>
    %168 = arith.divf %166, %167 : vector<2x16xf32>
    %169 = vector.broadcast %111 : f32 to vector<2x16xf32>
    %170 = arith.mulf %168, %169 : vector<2x16xf32>
    %171 = arith.addf %158, %170 : vector<2x16xf32>
    %172 = vector.broadcast %112 : f32 to vector<2x16xf32>
    %173 = arith.mulf %168, %172 : vector<2x16xf32>
    %174 = arith.addf %161, %173 : vector<2x16xf32>
    %175 = vector.broadcast %113 : f32 to vector<2x16xf32>
    %176 = arith.mulf %168, %175 : vector<2x16xf32>
    %177 = arith.addf %164, %176 : vector<2x16xf32>
    %178 = tpu.iota {dimensions = array<i32: 1>} : vector<1x16xi32>
    %c1_i32_90 = arith.constant 1 : i32
    %179 = vector.broadcast %c1_i32_90 : i32 to vector<1x16xi32>
    %180 = arith.cmpi sge, %178, %179 : vector<1x16xi32>
    %c1_i32_91 = arith.constant 1 : i32
    %181 = tpu.dynamic_rotate %171 by %c1_i32_91 dim 1 : vector<2x16xf32>, i32 -> vector<2x16xf32>
    %cst_92 = arith.constant 0.000000e+00 : f32
    %182 = vector.shape_cast %180 : vector<1x16xi1> to vector<1x16xi1>
    %183 = vector.broadcast %182 : vector<1x16xi1> to vector<2x16xi1>
    %184 = vector.broadcast %cst_92 : f32 to vector<2x16xf32>
    %185 = arith.select %183, %181, %184 : vector<2x16xi1>, vector<2x16xf32>
    %186 = arith.addf %174, %185 : vector<2x16xf32>
    %c14_i32_93 = arith.constant 14 : i32
    %187 = vector.broadcast %c14_i32_93 : i32 to vector<1x16xi32>
    %188 = arith.cmpi sle, %178, %187 : vector<1x16xi32>
    %c15_i32_94 = arith.constant 15 : i32
    %189 = tpu.dynamic_rotate %177 by %c15_i32_94 dim 1 : vector<2x16xf32>, i32 -> vector<2x16xf32>
    %cst_95 = arith.constant 0.000000e+00 : f32
    %190 = vector.shape_cast %188 : vector<1x16xi1> to vector<1x16xi1>
    %191 = vector.broadcast %190 : vector<1x16xi1> to vector<2x16xi1>
    %192 = vector.broadcast %cst_95 : f32 to vector<2x16xf32>
    %193 = arith.select %191, %189, %192 : vector<2x16xi1>, vector<2x16xf32>
    %194 = arith.addf %186, %193 : vector<2x16xf32>
    %c0_96 = arith.constant 0 : index
    %c0_97 = arith.constant 0 : index
    %195 = memref.load %arg6[%c0_96, %c0_97] : memref<2x2xf32, #tpu.memory_space<smem>>
    %196 = vector.broadcast %195 : f32 to vector<2x16xf32>
    %197 = arith.mulf %98, %196 : vector<2x16xf32>
    %c0_98 = arith.constant 0 : index
    %c1_99 = arith.constant 1 : index
    %198 = memref.load %arg6[%c0_98, %c1_99] : memref<2x2xf32, #tpu.memory_space<smem>>
    %199 = vector.broadcast %198 : f32 to vector<2x16xf32>
    %200 = arith.addf %197, %199 : vector<2x16xf32>
    %201 = arith.negf %200 : vector<2x16xf32>
    %202 = math.exp %201 : vector<2x16xf32>
    %cst_100 = arith.constant 1.000000e+00 : f32
    %203 = vector.broadcast %cst_100 : f32 to vector<2x16xf32>
    %204 = arith.addf %203, %202 : vector<2x16xf32>
    %205 = arith.divf %203, %204 : vector<2x16xf32>
    %c0_101 = arith.constant 0 : index
    %c0_102 = arith.constant 0 : index
    %206 = vector.load %arg7[%c0_101, %c0_102] : memref<2x16xf32, #tpu.memory_space<vmem>>, vector<2x16xf32>
    tpu.vector_store %arg7[%c0_101, %c0_102], %205 {strides = array<i32>} : memref<2x16xf32, #tpu.memory_space<vmem>>, vector<2x16xf32>,
    %c1_103 = arith.constant 1 : index
    %c0_104 = arith.constant 0 : index
    %207 = memref.load %arg6[%c1_103, %c0_104] : memref<2x2xf32, #tpu.memory_space<smem>>
    %208 = vector.broadcast %207 : f32 to vector<2x16xf32>
    %209 = arith.mulf %194, %208 : vector<2x16xf32>
    %c1_105 = arith.constant 1 : index
    %c1_106 = arith.constant 1 : index
    %210 = memref.load %arg6[%c1_105, %c1_106] : memref<2x2xf32, #tpu.memory_space<smem>>
    %211 = vector.broadcast %210 : f32 to vector<2x16xf32>
    %212 = arith.addf %209, %211 : vector<2x16xf32>
    %213 = arith.negf %212 : vector<2x16xf32>
    %214 = math.exp %213 : vector<2x16xf32>
    %cst_107 = arith.constant 1.000000e+00 : f32
    %215 = vector.broadcast %cst_107 : f32 to vector<2x16xf32>
    %216 = arith.addf %215, %214 : vector<2x16xf32>
    %217 = arith.divf %215, %216 : vector<2x16xf32>
    %c0_108 = arith.constant 0 : index
    %c0_109 = arith.constant 0 : index
    %218 = vector.load %arg8[%c0_108, %c0_109] : memref<2x16xf32, #tpu.memory_space<vmem>>, vector<2x16xf32>
    tpu.vector_store %arg8[%c0_108, %c0_109], %217 {strides = array<i32>} : memref<2x16xf32, #tpu.memory_space<vmem>>, vector<2x16xf32>,
    return
  }
  func.func @transform_0(%arg0: i32) -> (i32, i32, i32) {
    %c0_i32 = arith.constant 0 : i32
    %c0_i32_0 = arith.constant 0 : i32
    %c0_i32_1 = arith.constant 0 : i32
    return %arg0, %c0_i32, %c0_i32_0 : i32, i32, i32
  }
  func.func @transform_1(%arg0: i32) -> (i32, i32, i32) {
    %c0_i32 = arith.constant 0 : i32
    %c0_i32_0 = arith.constant 0 : i32
    %c0_i32_1 = arith.constant 0 : i32
    return %arg0, %c0_i32, %c0_i32_0 : i32, i32, i32
  }
  func.func @transform_2(%arg0: i32) -> (i32, i32, i32) {
    %c0_i32 = arith.constant 0 : i32
    %c0_i32_0 = arith.constant 0 : i32
    %c0_i32_1 = arith.constant 0 : i32
    return %arg0, %c0_i32, %c0_i32_0 : i32, i32, i32
  }
  func.func @transform_3(%arg0: i32) -> (i32, i32) {
    %c0_i32 = arith.constant 0 : i32
    %c0_i32_0 = arith.constant 0 : i32
    %c0_i32_1 = arith.constant 0 : i32
    return %c0_i32, %c0_i32_0 : i32, i32
  }
  func.func @transform_4(%arg0: i32) -> (i32, i32) {
    %c0_i32 = arith.constant 0 : i32
    %c0_i32_0 = arith.constant 0 : i32
    %c0_i32_1 = arith.constant 0 : i32
    return %c0_i32, %c0_i32_0 : i32, i32
  }
  func.func @transform_5(%arg0: i32) -> (i32, i32) {
    %c0_i32 = arith.constant 0 : i32
    %c0_i32_0 = arith.constant 0 : i32
    %c0_i32_1 = arith.constant 0 : i32
    return %c0_i32, %c0_i32_0 : i32, i32
  }
  func.func @transform_6(%arg0: i32) -> (i32, i32) {
    %c0_i32 = arith.constant 0 : i32
    %c0_i32_0 = arith.constant 0 : i32
    return %arg0, %c0_i32 : i32, i32
  }
  func.func @transform_7(%arg0: i32) -> (i32, i32) {
    %c0_i32 = arith.constant 0 : i32
    %c0_i32_0 = arith.constant 0 : i32
    return %arg0, %c0_i32 : i32, i32
  }
}

</mosaic_0001>

<llo_original>
// kernel: tpu_custom_call.1
$region0: #{tpu_custom_call.1}
  #allocation0 [shape = 'u32[]', space=smem, size = 0x4, offset = 0x4, fixed_abs, tag = 'smem constant byte address 0x4 - core index']
  #allocation1 [shape = 'u32[72,128]{1,0:T(1,128)}', space=vmem, size = 0x9000, scoped, tag = 'internal scratch']
  %s0 = inlined_call_operand.vmem [shape: f32[2,16,16], index: 0, kind: input, shape index: {}]
  %s1 = inlined_call_operand.vmem [shape: f32[2,16,8], index: 1, kind: input, shape index: {}]
  %s2 = inlined_call_operand.vmem [shape: f32[2,16,8], index: 2, kind: input, shape index: {}]
  %s3 = inlined_call_operand.vmem [shape: f32[5,3], index: 3, kind: input, shape index: {}]
  %s4 = inlined_call_operand.vmem [shape: f32[5,3], index: 4, kind: input, shape index: {}]
  %s5 = inlined_call_operand.vmem [shape: f32[2,2], index: 5, kind: input, shape index: {}]
  %s6 = inlined_call_operand.hbm [shape: f32[2,16], index: 6, kind: output, shape index: {0}]
  %s7 = inlined_call_operand.hbm [shape: f32[2,16], index: 7, kind: output, shape index: {1}]
  %8 = xla_tuple %s6, %s7
  %s9 = sld [smem:[#allocation0]]
  $region54: #{tpu_custom_call.1} parent=0
    _
  %s11 = ssub.s32 1, %s9
  %s12 = scalar_select 0, %s11, %s9
  $region1: #{tpu_custom_call.1} parent=0
    #allocation2 [shape = 'u8[4096]{0}', space=smem, size = 0x1000, scoped, tag = 'input window, operand 3, single buffered']
    #allocation3 [shape = 's32[1]{0}', space=sflag, size = 0x4, scoped, tag = 'scoped memory for tpu_custom_call.1']
    #allocation4 [shape = 's32[1]{0}', space=sflag, size = 0x4, scoped, tag = 'scoped memory for tpu_custom_call.1']
    #allocation5 [shape = 'u8[4096]{0}', space=smem, size = 0x1000, scoped, tag = 'input window, operand 4, single buffered']
    #allocation6 [shape = 's32[1]{0}', space=sflag, size = 0x4, scoped, tag = 'scoped memory for tpu_custom_call.1']
    #allocation7 [shape = 'u8[1024]{0}', space=smem, size = 0x400, scoped, tag = 'input window, operand 5, single buffered']
    #allocation8 [shape = 'u8[1024]{0}', space=vmem, size = 0x400, scoped, tag = 'output window, operand 0, single buffered']
    #allocation9 [shape = 'u8[1024]{0}', space=vmem, size = 0x400, scoped, tag = 'output window, operand 1, single buffered']
    #allocation10 [shape = 's32[1]{0}', space=sflag, size = 0x4, scoped, tag = 'scoped memory for tpu_custom_call.1']
    %13 = vsyncpa [#allocation4], 0
    %14 = vsyncpa [#allocation6], 0
    %15 = vsyncpa [#allocation3], 0
    %16 = vsyncpa [#allocation10], 0
    // Predicated region
    $region2: #{tpu_custom_call.1} parent=1 // pred_check
      _
    $region3: #{tpu_custom_call.1} parent=1 // pred_check_branch
      %18 = sbr.rel (0) target = $region5
    $region4: #{tpu_custom_call.1} parent=1 // pred_region
      _
    $region5: #{tpu_custom_call.1} parent=1 // pred_fallthru
      _
    // Predicated region
    $region6: #{tpu_custom_call.1} parent=1 // pred_check
      _
    $region7: #{tpu_custom_call.1} parent=1 // pred_check_branch
      %20 = sbr.rel (0) target = $region9
    $region8: #{tpu_custom_call.1} parent=1 // pred_region
      _
    $region9: #{tpu_custom_call.1} parent=1 // pred_fallthru
      _
    // Predicated region
    $region10: #{tpu_custom_call.1} parent=1 // pred_check
      _
    $region11: #{tpu_custom_call.1} parent=1 // pred_check_branch
      %22 = sbr.rel (0) target = $region13
    $region12: #{tpu_custom_call.1} parent=1 // pred_region
      _
    $region13: #{tpu_custom_call.1} parent=1 // pred_fallthru
      _
    // Predicated region
    $region14: #{tpu_custom_call.1} parent=1 // pred_check
      _
    $region15: #{tpu_custom_call.1} parent=1 // pred_check_branch
      %24 = sbr.rel (0) target = $region17
    $region16: #{tpu_custom_call.1} parent=1 // pred_region
      %26 = vsyncadd [#allocation4], 0
      %s28 = sshll.u32 %s3, 4
      %s29 = int_to_ptr.vmem [resolvable:$true] %s28
      %31 = dma.vmem_to_smem %s29, 128, [#allocation2], [#allocation4]
    $region17: #{tpu_custom_call.1} parent=1 // pred_fallthru
      _
    // Predicated region
    $region18: #{tpu_custom_call.1} parent=1 // pred_check
      _
    $region19: #{tpu_custom_call.1} parent=1 // pred_check_branch
      %33 = sbr.rel (0) target = $region21
    $region20: #{tpu_custom_call.1} parent=1 // pred_region
      %35 = vsyncadd [#allocation6], 0
      %s37 = sshll.u32 %s4, 4
      %s38 = int_to_ptr.vmem [resolvable:$true] %s37
      %40 = dma.vmem_to_smem %s38, 128, [#allocation5], [#allocation6]
    $region21: #{tpu_custom_call.1} parent=1 // pred_fallthru
      _
    // Predicated region
    $region22: #{tpu_custom_call.1} parent=1 // pred_check
      _
    $region23: #{tpu_custom_call.1} parent=1 // pred_check_branch
      %42 = sbr.rel (0) target = $region25
    $region24: #{tpu_custom_call.1} parent=1 // pred_region
      %44 = vsyncadd [#allocation6], 0
      %s46 = sshll.u32 %s5, 4
      %s47 = int_to_ptr.vmem [resolvable:$true] %s46
      %49 = dma.vmem_to_smem %s47, 32, [#allocation7], [#allocation6]
    $region25: #{tpu_custom_call.1} parent=1 // pred_fallthru
      _
    // Predicated region
    $region26: #{tpu_custom_call.1} parent=1 // pred_check
      _
    $region27: #{tpu_custom_call.1} parent=1 // pred_check_branch
      %51 = sbr.rel (0) target = $region29
    $region28: #{tpu_custom_call.1} parent=1 // pred_region
      %53 = dma.done [#allocation4], 128
    $region29: #{tpu_custom_call.1} parent=1 // pred_fallthru
      _
    // Predicated region
    $region30: #{tpu_custom_call.1} parent=1 // pred_check
      _
    $region31: #{tpu_custom_call.1} parent=1 // pred_check_branch
      %55 = sbr.rel (0) target = $region33
    $region32: #{tpu_custom_call.1} parent=1 // pred_region
      %57 = dma.done [#allocation6], 128
    $region33: #{tpu_custom_call.1} parent=1 // pred_fallthru
      _
    // Predicated region
    $region34: #{tpu_custom_call.1} parent=1 // pred_check
      _
    $region35: #{tpu_custom_call.1} parent=1 // pred_check_branch
      %59 = sbr.rel (0) target = $region37
    $region36: #{tpu_custom_call.1} parent=1 // pred_region
      %61 = dma.done [#allocation6], 32
    $region37: #{tpu_custom_call.1} parent=1 // pred_fallthru
      _
    %62 = sfence
    %v63 = vld [vmem:[%s0] sm:$0xff]
    %v64 = vld [vmem:[%s0 + $0x8] sm:$0xff]
    %v65 = vld [vmem:[%s0 + $0x10] sm:$0xff]
    %v66 = vld [vmem:[%s0 + $0x18] sm:$0xff]
    %v67 = vld [vmem:[%s1] sm:$0xff]
    %v68 = vld [vmem:[%s1 + $0x8] sm:$0xff]
    %v69 = vld [vmem:[%s1 + $0x10] sm:$0xff]
    %v70 = vld [vmem:[%s1 + $0x18] sm:$0xff]
    %v71 = vld [vmem:[%s2] sm:$0xff]
    %v72 = vld [vmem:[%s2 + $0x8] sm:$0xff]
    %v73 = vld [vmem:[%s2 + $0x10] sm:$0xff]
    %v74 = vld [vmem:[%s2 + $0x18] sm:$0xff]
    %s75 = sld [smem:[#allocation2]]
    %s76 = sld [smem:[#allocation2 + $0x1]]
    %s77 = sld [smem:[#allocation2 + $0x2]]
    %s78 = sld [smem:[#allocation2 + $0x80]]
    %s79 = sld [smem:[#allocation2 + $0x81]]
    %s80 = sld [smem:[#allocation2 + $0x82]]
    %s81 = sld [smem:[#allocation2 + $0x100]]
    %s82 = sld [smem:[#allocation2 + $0x101]]
    %s83 = sld [smem:[#allocation2 + $0x102]]
    %s84 = sld [smem:[#allocation2 + $0x180]]
    %s85 = sld [smem:[#allocation2 + $0x181]]
    %s86 = sld [smem:[#allocation2 + $0x182]]
    %s87 = sld [smem:[#allocation2 + $0x200]]
    %s88 = sld [smem:[#allocation2 + $0x201]]
    %s89 = sld [smem:[#allocation2 + $0x202]]
    %vm90 = vcmask 64512
    %v91 = vsel %vm90, %v67, 0.0
    %92 = vadd.xlane.f32.xlu0 %v91
    %v93 = vpop.xlane.xlu0 %92
    %v94 = vsel %vm90, %v68, 0.0
    %95 = vadd.xlane.f32.xlu0 %v94
    %v96 = vpop.xlane.xlu0 %95
    %v97 = vsel %vm90, %v69, 0.0
    %98 = vadd.xlane.f32.xlu0 %v97
    %v99 = vpop.xlane.xlu0 %98
    %v100 = vsel %vm90, %v70, 0.0
    %101 = vadd.xlane.f32.xlu0 %v100
    %v102 = vpop.xlane.xlu0 %101
    %v103 = vrcp.pop 8.0
    %v104 = vmul.f32 8.0, %v103
    %v105 = vsub.f32 1.0, %v104
    %v106 = vmul.f32 %v103, %v105
    %v107 = vadd.f32 %v103, %v106
    %vm108 = vweird.f32 %v103
    %v109 = vsel %vm108, %v103, %v107
    %v110 = vmul.f32 %v93, %v109
    %v111 = vmul.f32 %v96, %v109
    %v112 = vmul.f32 %v99, %v109
    %v113 = vmul.f32 %v102, %v109
    %v114 = vstv %s75
    %v115 = vmul.f32 %v110, %v114
    %v116 = vmul.f32 %v111, %v114
    %v117 = vmul.f32 %v112, %v114
    %v118 = vmul.f32 %v113, %v114
    %v119 = vadd.f32 %v115, 0.0
    %v120 = vadd.f32 %v116, 0.0
    %v121 = vadd.f32 %v117, 0.0
    %v122 = vadd.f32 %v118, 0.0
    %v123 = vstv %s76
    %v124 = vmul.f32 %v110, %v123
    %v125 = vmul.f32 %v111, %v123
    %v126 = vmul.f32 %v112, %v123
    %v127 = vmul.f32 %v113, %v123
    %v128 = vadd.f32 %v124, 0.0
    %v129 = vadd.f32 %v125, 0.0
    %v130 = vadd.f32 %v126, 0.0
    %v131 = vadd.f32 %v127, 0.0
    %v132 = vstv %s77
    %v133 = vmul.f32 %v110, %v132
    %v134 = vmul.f32 %v111, %v132
    %v135 = vmul.f32 %v112, %v132
    %v136 = vmul.f32 %v113, %v132
    %v137 = vadd.f32 %v133, 0.0
    %v138 = vadd.f32 %v134, 0.0
    %v139 = vadd.f32 %v135, 0.0
    %v140 = vadd.f32 %v136, 0.0
    %v141 = vsel %vm90, %v67, -inf
    %142 = vmax.xlane.f32.xlu0 %v141
    %v143 = vpop.xlane.xlu0 %142
    %v144 = vsel %vm90, %v68, -inf
    %145 = vmax.xlane.f32.xlu0 %v144
    %v146 = vpop.xlane.xlu0 %145
    %v147 = vsel %vm90, %v69, -inf
    %148 = vmax.xlane.f32.xlu0 %v147
    %v149 = vpop.xlane.xlu0 %148
    %v150 = vsel %vm90, %v70, -inf
    %151 = vmax.xlane.f32.xlu0 %v150
    %v152 = vpop.xlane.xlu0 %151
    %v153 = vstv %s78
    %v154 = vmul.f32 %v143, %v153
    %v155 = vmul.f32 %v146, %v153
    %v156 = vmul.f32 %v149, %v153
    %v157 = vmul.f32 %v152, %v153
    %v158 = vadd.f32 %v119, %v154
    %v159 = vadd.f32 %v120, %v155
    %v160 = vadd.f32 %v121, %v156
    %v161 = vadd.f32 %v122, %v157
    %v162 = vstv %s79
    %v163 = vmul.f32 %v143, %v162
    %v164 = vmul.f32 %v146, %v162
    %v165 = vmul.f32 %v149, %v162
    %v166 = vmul.f32 %v152, %v162
    %v167 = vadd.f32 %v128, %v163
    %v168 = vadd.f32 %v129, %v164
    %v169 = vadd.f32 %v130, %v165
    %v170 = vadd.f32 %v131, %v166
    %v171 = vstv %s80
    %v172 = vmul.f32 %v143, %v171
    %v173 = vmul.f32 %v146, %v171
    %v174 = vmul.f32 %v149, %v171
    %v175 = vmul.f32 %v152, %v171
    %v176 = vadd.f32 %v137, %v172
    %v177 = vadd.f32 %v138, %v173
    %v178 = vadd.f32 %v139, %v174
    %v179 = vadd.f32 %v140, %v175
    %vm180 = vcmask 48128
    %v181 = vsel %vm180, %v63, 0.0
    %182 = vadd.xlane.f32.xlu0 %v181
    %v183 = vpop.xlane.xlu0 %182
    %v184 = vsel %vm180, %v64, 0.0
    %185 = vadd.xlane.f32.xlu0 %v184
    %v186 = vpop.xlane.xlu0 %185
    %v187 = vsel %vm180, %v65, 0.0
    %188 = vadd.xlane.f32.xlu0 %v187
    %v189 = vpop.xlane.xlu0 %188
    %v190 = vsel %vm180, %v66, 0.0
    %191 = vadd.xlane.f32.xlu0 %v190
    %v192 = vpop.xlane.xlu0 %191
    %v193 = vrcp.pop 6.0
    %v194 = vmul.f32 6.0, %v193
    %v195 = vsub.f32 1.0, %v194
    %v196 = vmul.f32 %v193, %v195
    %v197 = vadd.f32 %v193, %v196
    %vm198 = vweird.f32 %v193
    %v199 = vsel %vm198, %v193, %v197
    %v200 = vmul.f32 %v183, %v199
    %v201 = vmul.f32 %v186, %v199
    %v202 = vmul.f32 %v189, %v199
    %v203 = vmul.f32 %v192, %v199
    %v204 = vstv %s81
    %v205 = vmul.f32 %v200, %v204
    %v206 = vmul.f32 %v201, %v204
    %v207 = vmul.f32 %v202, %v204
    %v208 = vmul.f32 %v203, %v204
    %v209 = vadd.f32 %v158, %v205
    %v210 = vadd.f32 %v159, %v206
    %v211 = vadd.f32 %v160, %v207
    %v212 = vadd.f32 %v161, %v208
    %v213 = vstv %s82
    %v214 = vmul.f32 %v200, %v213
    %v215 = vmul.f32 %v201, %v213
    %v216 = vmul.f32 %v202, %v213
    %v217 = vmul.f32 %v203, %v213
    %v218 = vadd.f32 %v167, %v214
    %v219 = vadd.f32 %v168, %v215
    %v220 = vadd.f32 %v169, %v216
    %v221 = vadd.f32 %v170, %v217
    %v222 = vstv %s83
    %v223 = vmul.f32 %v200, %v222
    %v224 = vmul.f32 %v201, %v222
    %v225 = vmul.f32 %v202, %v222
    %v226 = vmul.f32 %v203, %v222
    %v227 = vadd.f32 %v176, %v223
    %v228 = vadd.f32 %v177, %v224
    %v229 = vadd.f32 %v178, %v225
    %v230 = vadd.f32 %v179, %v226
    %235 = vrot.lane.b32.xlu0 %v63, 122
    %v236 = vpop.permute.xlu0 %235
    %237 = vrot.lane.b32.xlu0 %v64, 122
    %v238 = vpop.permute.xlu0 %237
    %239 = vrot.lane.b32.xlu0 %v65, 122
    %v240 = vpop.permute.xlu0 %239
    %241 = vrot.lane.b32.xlu0 %v66, 122
    %v242 = vpop.permute.xlu0 %241
    %v247 = vsel %vm180, %v236, 0.0
    %248 = vadd.xlane.f32.xlu0 %v247
    %v249 = vpop.xlane.xlu0 %248
    %v250 = vsel %vm180, %v238, 0.0
    %251 = vadd.xlane.f32.xlu0 %v250
    %v252 = vpop.xlane.xlu0 %251
    %v253 = vsel %vm180, %v240, 0.0
    %254 = vadd.xlane.f32.xlu0 %v253
    %v255 = vpop.xlane.xlu0 %254
    %v256 = vsel %vm180, %v242, 0.0
    %257 = vadd.xlane.f32.xlu0 %v256
    %v258 = vpop.xlane.xlu0 %257
    %v259 = vmul.f32 %v249, %v199
    %v260 = vmul.f32 %v252, %v199
    %v261 = vmul.f32 %v255, %v199
    %v262 = vmul.f32 %v258, %v199
    %v263 = vstv %s84
    %v264 = vmul.f32 %v259, %v263
    %v265 = vmul.f32 %v260, %v263
    %v266 = vmul.f32 %v261, %v263
    %v267 = vmul.f32 %v262, %v263
    %v268 = vadd.f32 %v209, %v264
    %v269 = vadd.f32 %v210, %v265
    %v270 = vadd.f32 %v211, %v266
    %v271 = vadd.f32 %v212, %v267
    %v272 = vstv %s85
    %v273 = vmul.f32 %v259, %v272
    %v274 = vmul.f32 %v260, %v272
    %v275 = vmul.f32 %v261, %v272
    %v276 = vmul.f32 %v262, %v272
    %v277 = vadd.f32 %v218, %v273
    %v278 = vadd.f32 %v219, %v274
    %v279 = vadd.f32 %v220, %v275
    %v280 = vadd.f32 %v221, %v276
    %v281 = vstv %s86
    %v282 = vmul.f32 %v259, %v281
    %v283 = vmul.f32 %v260, %v281
    %v284 = vmul.f32 %v261, %v281
    %v285 = vmul.f32 %v262, %v281
    %v286 = vadd.f32 %v227, %v282
    %v287 = vadd.f32 %v228, %v283
    %v288 = vadd.f32 %v229, %v284
    %v289 = vadd.f32 %v230, %v285
    %290 = vrot.lane.b32.xlu0 %v63, 116
    %v291 = vpop.permute.xlu0 %290
    %292 = vrot.lane.b32.xlu0 %v64, 116
    %v293 = vpop.permute.xlu0 %292
    %294 = vrot.lane.b32.xlu0 %v65, 116
    %v295 = vpop.permute.xlu0 %294
    %296 = vrot.lane.b32.xlu0 %v66, 116
    %v297 = vpop.permute.xlu0 %296
    %vm302 = vcmask 31744
    %v303 = vsel %vm302, %v291, 0.0
    %304 = vadd.xlane.f32.xlu0 %v303
    %v305 = vpop.xlane.xlu0 %304
    %v306 = vsel %vm302, %v293, 0.0
    %307 = vadd.xlane.f32.xlu0 %v306
    %v308 = vpop.xlane.xlu0 %307
    %v309 = vsel %vm302, %v295, 0.0
    %310 = vadd.xlane.f32.xlu0 %v309
    %v311 = vpop.xlane.xlu0 %310
    %v312 = vsel %vm302, %v297, 0.0
    %313 = vadd.xlane.f32.xlu0 %v312
    %v314 = vpop.xlane.xlu0 %313
    %v315 = vrcp.pop 4.0
    %v316 = vmul.f32 4.0, %v315
    %v317 = vsub.f32 1.0, %v316
    %v318 = vmul.f32 %v315, %v317
    %v319 = vadd.f32 %v315, %v318
    %vm320 = vweird.f32 %v315
    %v321 = vsel %vm320, %v315, %v319
    %v322 = vmul.f32 %v305, %v321
    %v323 = vmul.f32 %v308, %v321
    %v324 = vmul.f32 %v311, %v321
    %v325 = vmul.f32 %v314, %v321
    %v326 = vstv %s87
    %v327 = vmul.f32 %v322, %v326
    %v328 = vmul.f32 %v323, %v326
    %v329 = vmul.f32 %v324, %v326
    %v330 = vmul.f32 %v325, %v326
    %v331 = vadd.f32 %v268, %v327
    %v332 = vadd.f32 %v269, %v328
    %v333 = vadd.f32 %v270, %v329
    %v334 = vadd.f32 %v271, %v330
    %v335 = vstv %s88
    %v336 = vmul.f32 %v322, %v335
    %v337 = vmul.f32 %v323, %v335
    %v338 = vmul.f32 %v324, %v335
    %v339 = vmul.f32 %v325, %v335
    %v340 = vadd.f32 %v277, %v336
    %v341 = vadd.f32 %v278, %v337
    %v342 = vadd.f32 %v279, %v338
    %v343 = vadd.f32 %v280, %v339
    %v344 = vstv %s89
    %v345 = vmul.f32 %v322, %v344
    %v346 = vmul.f32 %v323, %v344
    %v347 = vmul.f32 %v324, %v344
    %v348 = vmul.f32 %v325, %v344
    %v349 = vadd.f32 %v286, %v345
    %v350 = vadd.f32 %v287, %v346
    %v351 = vadd.f32 %v288, %v347
    %v352 = vadd.f32 %v289, %v348
    %v353 = vlaneseq
    %v354 = vand.u32 %v353, 127
    %vm355 = vcmp.ge.s32.totalorder %v354, 1
    %v360 = vperm.slane %v331, %v354
    %v361 = vadd.s32 %v354, 4294967288
    %v362 = vperm.slane %v332, %v361
    %vm363 = vcmask 130112
    %v364 = vsel %vm363, %v362, %v360
    %v365 = vperm.slane %v333, %v354
    %v366 = vperm.slane %v334, %v361
    %v367 = vsel %vm363, %v366, %v365
    %vm368 = vcmask 1041409
    %v369 = vsel %vm368, %v367, %v364
    %vm371 = vcmask 1047680
    %372 = vrot.lane.b32.xlu0 %v369, 16
    %v373 = vpop.permute.xlu0 %372
    %v374 = vsel %vm371, %v373, %v369
    %375 = vrot.lane.b32.xlu0 %v374, 16
    %v376 = vpop.permute.xlu0 %375
    %v377 = vsel %vm371, %v376, %v369
    %v378 = vsel %vm355, 1, 0
    %vm379 = vcmp.eq.s32.totalorder %v378, 1
    %381 = vrot.lane.b32.xlu0 %v377, 113
    %v382 = vpop.permute.xlu0 %381
    %v384 = vsel %vm379, %v382, 0.0
    %v386 = vperm.slane %v384, 0
    %v387 = vlaneseq
    %v388 = vshrl.u32 %v387, 7
    %390 = vset.pattern.permute.xlu0 %v388
    %391 = vperm.xlu0 %390, %v386
    %v392 = vpop.permute.xlu0 %391
    %v393 = vlaneseq
    %v394 = vshrl.u32 %v393, 7
    %v395 = vadd.s32 %v394, 8
    %396 = vset.pattern.permute.xlu0 %v395
    %397 = vperm.xlu0 %396, %v386
    %v398 = vpop.permute.xlu0 %397
    %v399 = vperm.slane %v384, 1
    %v400 = vlaneseq
    %v401 = vshrl.u32 %v400, 7
    %403 = vset.pattern.permute.xlu0 %v401
    %404 = vperm.xlu0 %403, %v399
    %v405 = vpop.permute.xlu0 %404
    %v406 = vlaneseq
    %v407 = vshrl.u32 %v406, 7
    %v408 = vadd.s32 %v407, 8
    %409 = vset.pattern.permute.xlu0 %v408
    %410 = vperm.xlu0 %409, %v399
    %v411 = vpop.permute.xlu0 %410
    %v416 = vadd.f32 %v340, %v392
    %v417 = vadd.f32 %v341, %v398
    %v418 = vadd.f32 %v342, %v405
    %v419 = vadd.f32 %v343, %v411
    %vm420 = vcmp.le.s32.totalorder %v354, 14
    %v425 = vperm.slane %v349, %v354
    %v426 = vperm.slane %v350, %v361
    %v427 = vsel %vm363, %v426, %v425
    %v428 = vperm.slane %v351, %v354
    %v429 = vperm.slane %v352, %v361
    %v430 = vsel %vm363, %v429, %v428
    %v431 = vsel %vm368, %v430, %v427
    %433 = vrot.lane.b32.xlu0 %v431, 16
    %v434 = vpop.permute.xlu0 %433
    %v435 = vsel %vm371, %v434, %v431
    %436 = vrot.lane.b32.xlu0 %v435, 16
    %v437 = vpop.permute.xlu0 %436
    %v438 = vsel %vm371, %v437, %v431
    %v439 = vsel %vm420, 1, 0
    %vm440 = vcmp.eq.s32.totalorder %v439, 1
    %442 = vrot.lane.b32.xlu0 %v438, 127
    %v443 = vpop.permute.xlu0 %442
    %v445 = vsel %vm440, %v443, 0.0
    %v447 = vperm.slane %v445, 0
    %v448 = vlaneseq
    %v449 = vshrl.u32 %v448, 7
    %451 = vset.pattern.permute.xlu0 %v449
    %452 = vperm.xlu0 %451, %v447
    %v453 = vpop.permute.xlu0 %452
    %v454 = vlaneseq
    %v455 = vshrl.u32 %v454, 7
    %v456 = vadd.s32 %v455, 8
    %457 = vset.pattern.permute.xlu0 %v456
    %458 = vperm.xlu0 %457, %v447
    %v459 = vpop.permute.xlu0 %458
    %v460 = vperm.slane %v445, 1
    %v461 = vlaneseq
    %v462 = vshrl.u32 %v461, 7
    %464 = vset.pattern.permute.xlu0 %v462
    %465 = vperm.xlu0 %464, %v460
    %v466 = vpop.permute.xlu0 %465
    %v467 = vlaneseq
    %v468 = vshrl.u32 %v467, 7
    %v469 = vadd.s32 %v468, 8
    %470 = vset.pattern.permute.xlu0 %v469
    %471 = vperm.xlu0 %470, %v460
    %v472 = vpop.permute.xlu0 %471
    %v477 = vadd.f32 %v416, %v453
    %v478 = vadd.f32 %v417, %v459
    %v479 = vadd.f32 %v418, %v466
    %v480 = vadd.f32 %v419, %v472
    %s481 = sld [smem:[#allocation5]]
    %s482 = sld [smem:[#allocation5 + $0x1]]
    %s483 = sld [smem:[#allocation5 + $0x2]]
    %s484 = sld [smem:[#allocation5 + $0x80]]
    %s485 = sld [smem:[#allocation5 + $0x81]]
    %s486 = sld [smem:[#allocation5 + $0x82]]
    %s487 = sld [smem:[#allocation5 + $0x100]]
    %s488 = sld [smem:[#allocation5 + $0x101]]
    %s489 = sld [smem:[#allocation5 + $0x102]]
    %s490 = sld [smem:[#allocation5 + $0x180]]
    %s491 = sld [smem:[#allocation5 + $0x181]]
    %s492 = sld [smem:[#allocation5 + $0x182]]
    %s493 = sld [smem:[#allocation5 + $0x200]]
    %s494 = sld [smem:[#allocation5 + $0x201]]
    %s495 = sld [smem:[#allocation5 + $0x202]]
    %v496 = vsel %vm90, %v71, 0.0
    %497 = vadd.xlane.f32.xlu0 %v496
    %v498 = vpop.xlane.xlu0 %497
    %v499 = vsel %vm90, %v72, 0.0
    %500 = vadd.xlane.f32.xlu0 %v499
    %v501 = vpop.xlane.xlu0 %500
    %v502 = vsel %vm90, %v73, 0.0
    %503 = vadd.xlane.f32.xlu0 %v502
    %v504 = vpop.xlane.xlu0 %503
    %v505 = vsel %vm90, %v74, 0.0
    %506 = vadd.xlane.f32.xlu0 %v505
    %v507 = vpop.xlane.xlu0 %506
    %v508 = vmul.f32 %v498, %v109
    %v509 = vmul.f32 %v501, %v109
    %v510 = vmul.f32 %v504, %v109
    %v511 = vmul.f32 %v507, %v109
    %v512 = vstv %s481
    %v513 = vmul.f32 %v508, %v512
    %v514 = vmul.f32 %v509, %v512
    %v515 = vmul.f32 %v510, %v512
    %v516 = vmul.f32 %v511, %v512
    %v517 = vadd.f32 %v513, 0.0
    %v518 = vadd.f32 %v514, 0.0
    %v519 = vadd.f32 %v515, 0.0
    %v520 = vadd.f32 %v516, 0.0
    %v521 = vstv %s482
    %v522 = vmul.f32 %v508, %v521
    %v523 = vmul.f32 %v509, %v521
    %v524 = vmul.f32 %v510, %v521
    %v525 = vmul.f32 %v511, %v521
    %v526 = vadd.f32 %v522, 0.0
    %v527 = vadd.f32 %v523, 0.0
    %v528 = vadd.f32 %v524, 0.0
    %v529 = vadd.f32 %v525, 0.0
    %v530 = vstv %s483
    %v531 = vmul.f32 %v508, %v530
    %v532 = vmul.f32 %v509, %v530
    %v533 = vmul.f32 %v510, %v530
    %v534 = vmul.f32 %v511, %v530
    %v535 = vadd.f32 %v531, 0.0
    %v536 = vadd.f32 %v532, 0.0
    %v537 = vadd.f32 %v533, 0.0
    %v538 = vadd.f32 %v534, 0.0
    %v539 = vsel %vm90, %v71, -inf
    %540 = vmax.xlane.f32.xlu0 %v539
    %v541 = vpop.xlane.xlu0 %540
    %v542 = vsel %vm90, %v72, -inf
    %543 = vmax.xlane.f32.xlu0 %v542
    %v544 = vpop.xlane.xlu0 %543
    %v545 = vsel %vm90, %v73, -inf
    %546 = vmax.xlane.f32.xlu0 %v545
    %v547 = vpop.xlane.xlu0 %546
    %v548 = vsel %vm90, %v74, -inf
    %549 = vmax.xlane.f32.xlu0 %v548
    %v550 = vpop.xlane.xlu0 %549
    %v551 = vstv %s484
    %v552 = vmul.f32 %v541, %v551
    %v553 = vmul.f32 %v544, %v551
    %v554 = vmul.f32 %v547, %v551
    %v555 = vmul.f32 %v550, %v551
    %v556 = vadd.f32 %v517, %v552
    %v557 = vadd.f32 %v518, %v553
    %v558 = vadd.f32 %v519, %v554
    %v559 = vadd.f32 %v520, %v555
    %v560 = vstv %s485
    %v561 = vmul.f32 %v541, %v560
    %v562 = vmul.f32 %v544, %v560
    %v563 = vmul.f32 %v547, %v560
    %v564 = vmul.f32 %v550, %v560
    %v565 = vadd.f32 %v526, %v561
    %v566 = vadd.f32 %v527, %v562
    %v567 = vadd.f32 %v528, %v563
    %v568 = vadd.f32 %v529, %v564
    %v569 = vstv %s486
    %v570 = vmul.f32 %v541, %v569
    %v571 = vmul.f32 %v544, %v569
    %v572 = vmul.f32 %v547, %v569
    %v573 = vmul.f32 %v550, %v569
    %v574 = vadd.f32 %v535, %v570
    %v575 = vadd.f32 %v536, %v571
    %v576 = vadd.f32 %v537, %v572
    %v577 = vadd.f32 %v538, %v573
    %vm578 = vcmask 128000
    %v579 = vsel %vm578, %v63, 0.0
    %v580 = vrot.slane %v579, 4
    %v581 = vadd.f32 %v579, %v580
    %v582 = vrot.slane %v581, 2
    %v583 = vadd.f32 %v581, %v582
    %v584 = vrot.slane %v583, 1
    %v585 = vadd.f32 %v583, %v584
    %v586 = vsel %vm578, %v65, 0.0
    %v587 = vrot.slane %v586, 4
    %v588 = vadd.f32 %v586, %v587
    %v589 = vrot.slane %v588, 2
    %v590 = vadd.f32 %v588, %v589
    %v591 = vrot.slane %v590, 1
    %v592 = vadd.f32 %v590, %v591
    %v593 = vmul.f32 %v585, %v199
    %v594 = vmul.f32 %v592, %v199
    %v595 = vstv %s487
    %v596 = vmul.f32 %v593, %v595
    %v597 = vmul.f32 %v594, %v595
    %v600 = vlaneseq
    %v601 = vshrl.u32 %v600, 7
    %603 = vset.pattern.permute.xlu0 %v601
    %604 = vperm.xlu0 %603, %v596
    %v605 = vpop.permute.xlu0 %604
    %v606 = vlaneseq
    %v607 = vshrl.u32 %v606, 7
    %v608 = vadd.s32 %v607, 8
    %609 = vset.pattern.permute.xlu0 %v608
    %610 = vperm.xlu0 %609, %v596
    %v611 = vpop.permute.xlu0 %610
    %v612 = vlaneseq
    %v613 = vshrl.u32 %v612, 7
    %615 = vset.pattern.permute.xlu0 %v613
    %616 = vperm.xlu0 %615, %v597
    %v617 = vpop.permute.xlu0 %616
    %v618 = vlaneseq
    %v619 = vshrl.u32 %v618, 7
    %v620 = vadd.s32 %v619, 8
    %621 = vset.pattern.permute.xlu0 %v620
    %622 = vperm.xlu0 %621, %v597
    %v623 = vpop.permute.xlu0 %622
    %v628 = vadd.f32 %v556, %v605
    %v629 = vadd.f32 %v557, %v611
    %v630 = vadd.f32 %v558, %v617
    %v631 = vadd.f32 %v559, %v623
    %v632 = vstv %s488
    %v633 = vmul.f32 %v593, %v632
    %v634 = vmul.f32 %v594, %v632
    %v637 = vlaneseq
    %v638 = vshrl.u32 %v637, 7
    %640 = vset.pattern.permute.xlu0 %v638
    %641 = vperm.xlu0 %640, %v633
    %v642 = vpop.permute.xlu0 %641
    %v643 = vlaneseq
    %v644 = vshrl.u32 %v643, 7
    %v645 = vadd.s32 %v644, 8
    %646 = vset.pattern.permute.xlu0 %v645
    %647 = vperm.xlu0 %646, %v633
    %v648 = vpop.permute.xlu0 %647
    %v649 = vlaneseq
    %v650 = vshrl.u32 %v649, 7
    %652 = vset.pattern.permute.xlu0 %v650
    %653 = vperm.xlu0 %652, %v634
    %v654 = vpop.permute.xlu0 %653
    %v655 = vlaneseq
    %v656 = vshrl.u32 %v655, 7
    %v657 = vadd.s32 %v656, 8
    %658 = vset.pattern.permute.xlu0 %v657
    %659 = vperm.xlu0 %658, %v634
    %v660 = vpop.permute.xlu0 %659
    %v665 = vadd.f32 %v565, %v642
    %v666 = vadd.f32 %v566, %v648
    %v667 = vadd.f32 %v567, %v654
    %v668 = vadd.f32 %v568, %v660
    %v669 = vstv %s489
    %v670 = vmul.f32 %v593, %v669
    %v671 = vmul.f32 %v594, %v669
    %v674 = vlaneseq
    %v675 = vshrl.u32 %v674, 7
    %677 = vset.pattern.permute.xlu0 %v675
    %678 = vperm.xlu0 %677, %v670
    %v679 = vpop.permute.xlu0 %678
    %v680 = vlaneseq
    %v681 = vshrl.u32 %v680, 7
    %v682 = vadd.s32 %v681, 8
    %683 = vset.pattern.permute.xlu0 %v682
    %684 = vperm.xlu0 %683, %v670
    %v685 = vpop.permute.xlu0 %684
    %v686 = vlaneseq
    %v687 = vshrl.u32 %v686, 7
    %689 = vset.pattern.permute.xlu0 %v687
    %690 = vperm.xlu0 %689, %v671
    %v691 = vpop.permute.xlu0 %690
    %v692 = vlaneseq
    %v693 = vshrl.u32 %v692, 7
    %v694 = vadd.s32 %v693, 8
    %695 = vset.pattern.permute.xlu0 %v694
    %696 = vperm.xlu0 %695, %v671
    %v697 = vpop.permute.xlu0 %696
    %v702 = vadd.f32 %v574, %v679
    %v703 = vadd.f32 %v575, %v685
    %v704 = vadd.f32 %v576, %v691
    %v705 = vadd.f32 %v577, %v697
    %vm706 = vcmask 1041408
    %v707 = vrot.slane %v63, 6
    %v708 = vrot.slane %v64, 6
    %v709 = vsel %vm706, %v707, %v708
    %v710 = vrot.slane %v65, 6
    %v711 = vrot.slane %v66, 6
    %v712 = vsel %vm706, %v710, %v711
    %v715 = vsel %vm578, %v709, 0.0
    %v716 = vrot.slane %v715, 4
    %v717 = vadd.f32 %v715, %v716
    %v718 = vrot.slane %v717, 2
    %v719 = vadd.f32 %v717, %v718
    %v720 = vrot.slane %v719, 1
    %v721 = vadd.f32 %v719, %v720
    %v722 = vsel %vm578, %v712, 0.0
    %v723 = vrot.slane %v722, 4
    %v724 = vadd.f32 %v722, %v723
    %v725 = vrot.slane %v724, 2
    %v726 = vadd.f32 %v724, %v725
    %v727 = vrot.slane %v726, 1
    %v728 = vadd.f32 %v726, %v727
    %v729 = vmul.f32 %v721, %v199
    %v730 = vmul.f32 %v728, %v199
    %v731 = vstv %s490
    %v732 = vmul.f32 %v729, %v731
    %v733 = vmul.f32 %v730, %v731
    %v736 = vlaneseq
    %v737 = vshrl.u32 %v736, 7
    %739 = vset.pattern.permute.xlu0 %v737
    %740 = vperm.xlu0 %739, %v732
    %v741 = vpop.permute.xlu0 %740
    %v742 = vlaneseq
    %v743 = vshrl.u32 %v742, 7
    %v744 = vadd.s32 %v743, 8
    %745 = vset.pattern.permute.xlu0 %v744
    %746 = vperm.xlu0 %745, %v732
    %v747 = vpop.permute.xlu0 %746
    %v748 = vlaneseq
    %v749 = vshrl.u32 %v748, 7
    %751 = vset.pattern.permute.xlu0 %v749
    %752 = vperm.xlu0 %751, %v733
    %v753 = vpop.permute.xlu0 %752
    %v754 = vlaneseq
    %v755 = vshrl.u32 %v754, 7
    %v756 = vadd.s32 %v755, 8
    %757 = vset.pattern.permute.xlu0 %v756
    %758 = vperm.xlu0 %757, %v733
    %v759 = vpop.permute.xlu0 %758
    %v764 = vadd.f32 %v628, %v741
    %v765 = vadd.f32 %v629, %v747
    %v766 = vadd.f32 %v630, %v753
    %v767 = vadd.f32 %v631, %v759
    %v768 = vstv %s491
    %v769 = vmul.f32 %v729, %v768
    %v770 = vmul.f32 %v730, %v768
    %v773 = vlaneseq
    %v774 = vshrl.u32 %v773, 7
    %776 = vset.pattern.permute.xlu0 %v774
    %777 = vperm.xlu0 %776, %v769
    %v778 = vpop.permute.xlu0 %777
    %v779 = vlaneseq
    %v780 = vshrl.u32 %v779, 7
    %v781 = vadd.s32 %v780, 8
    %782 = vset.pattern.permute.xlu0 %v781
    %783 = vperm.xlu0 %782, %v769
    %v784 = vpop.permute.xlu0 %783
    %v785 = vlaneseq
    %v786 = vshrl.u32 %v785, 7
    %788 = vset.pattern.permute.xlu0 %v786
    %789 = vperm.xlu0 %788, %v770
    %v790 = vpop.permute.xlu0 %789
    %v791 = vlaneseq
    %v792 = vshrl.u32 %v791, 7
    %v793 = vadd.s32 %v792, 8
    %794 = vset.pattern.permute.xlu0 %v793
    %795 = vperm.xlu0 %794, %v770
    %v796 = vpop.permute.xlu0 %795
    %v801 = vadd.f32 %v665, %v778
    %v802 = vadd.f32 %v666, %v784
    %v803 = vadd.f32 %v667, %v790
    %v804 = vadd.f32 %v668, %v796
    %v805 = vstv %s492
    %v806 = vmul.f32 %v729, %v805
    %v807 = vmul.f32 %v730, %v805
    %v810 = vlaneseq
    %v811 = vshrl.u32 %v810, 7
    %813 = vset.pattern.permute.xlu0 %v811
    %814 = vperm.xlu0 %813, %v806
    %v815 = vpop.permute.xlu0 %814
    %v816 = vlaneseq
    %v817 = vshrl.u32 %v816, 7
    %v818 = vadd.s32 %v817, 8
    %819 = vset.pattern.permute.xlu0 %v818
    %820 = vperm.xlu0 %819, %v806
    %v821 = vpop.permute.xlu0 %820
    %v822 = vlaneseq
    %v823 = vshrl.u32 %v822, 7
    %825 = vset.pattern.permute.xlu0 %v823
    %826 = vperm.xlu0 %825, %v807
    %v827 = vpop.permute.xlu0 %826
    %v828 = vlaneseq
    %v829 = vshrl.u32 %v828, 7
    %v830 = vadd.s32 %v829, 8
    %831 = vset.pattern.permute.xlu0 %v830
    %832 = vperm.xlu0 %831, %v807
    %v833 = vpop.permute.xlu0 %832
    %v838 = vadd.f32 %v702, %v815
    %v839 = vadd.f32 %v703, %v821
    %v840 = vadd.f32 %v704, %v827
    %v841 = vadd.f32 %v705, %v833
    %v842 = vrot.slane %v64, 4
    %v843 = vrot.slane %v66, 4
    %vm846 = vcmask 125952
    %v847 = vsel %vm846, %v842, 0.0
    %v848 = vrot.slane %v847, 4
    %v849 = vadd.f32 %v847, %v848
    %v850 = vrot.slane %v849, 2
    %v851 = vadd.f32 %v849, %v850
    %v852 = vrot.slane %v851, 1
    %v853 = vadd.f32 %v851, %v852
    %v854 = vsel %vm846, %v843, 0.0
    %v855 = vrot.slane %v854, 4
    %v856 = vadd.f32 %v854, %v855
    %v857 = vrot.slane %v856, 2
    %v858 = vadd.f32 %v856, %v857
    %v859 = vrot.slane %v858, 1
    %v860 = vadd.f32 %v858, %v859
    %v861 = vmul.f32 %v853, %v321
    %v862 = vmul.f32 %v860, %v321
    %v863 = vstv %s493
    %v864 = vmul.f32 %v861, %v863
    %v865 = vmul.f32 %v862, %v863
    %v868 = vlaneseq
    %v869 = vshrl.u32 %v868, 7
    %871 = vset.pattern.permute.xlu0 %v869
    %872 = vperm.xlu0 %871, %v864
    %v873 = vpop.permute.xlu0 %872
    %v874 = vlaneseq
    %v875 = vshrl.u32 %v874, 7
    %v876 = vadd.s32 %v875, 8
    %877 = vset.pattern.permute.xlu0 %v876
    %878 = vperm.xlu0 %877, %v864
    %v879 = vpop.permute.xlu0 %878
    %v880 = vlaneseq
    %v881 = vshrl.u32 %v880, 7
    %883 = vset.pattern.permute.xlu0 %v881
    %884 = vperm.xlu0 %883, %v865
    %v885 = vpop.permute.xlu0 %884
    %v886 = vlaneseq
    %v887 = vshrl.u32 %v886, 7
    %v888 = vadd.s32 %v887, 8
    %889 = vset.pattern.permute.xlu0 %v888
    %890 = vperm.xlu0 %889, %v865
    %v891 = vpop.permute.xlu0 %890
    %v896 = vadd.f32 %v764, %v873
    %v897 = vadd.f32 %v765, %v879
    %v898 = vadd.f32 %v766, %v885
    %v899 = vadd.f32 %v767, %v891
    %v900 = vstv %s494
    %v901 = vmul.f32 %v861, %v900
    %v902 = vmul.f32 %v862, %v900
    %v905 = vlaneseq
    %v906 = vshrl.u32 %v905, 7
    %908 = vset.pattern.permute.xlu0 %v906
    %909 = vperm.xlu0 %908, %v901
    %v910 = vpop.permute.xlu0 %909
    %v911 = vlaneseq
    %v912 = vshrl.u32 %v911, 7
    %v913 = vadd.s32 %v912, 8
    %914 = vset.pattern.permute.xlu0 %v913
    %915 = vperm.xlu0 %914, %v901
    %v916 = vpop.permute.xlu0 %915
    %v917 = vlaneseq
    %v918 = vshrl.u32 %v917, 7
    %920 = vset.pattern.permute.xlu0 %v918
    %921 = vperm.xlu0 %920, %v902
    %v922 = vpop.permute.xlu0 %921
    %v923 = vlaneseq
    %v924 = vshrl.u32 %v923, 7
    %v925 = vadd.s32 %v924, 8
    %926 = vset.pattern.permute.xlu0 %v925
    %927 = vperm.xlu0 %926, %v902
    %v928 = vpop.permute.xlu0 %927
    %v933 = vadd.f32 %v801, %v910
    %v934 = vadd.f32 %v802, %v916
    %v935 = vadd.f32 %v803, %v922
    %v936 = vadd.f32 %v804, %v928
    %v937 = vstv %s495
    %v938 = vmul.f32 %v861, %v937
    %v939 = vmul.f32 %v862, %v937
    %v942 = vlaneseq
    %v943 = vshrl.u32 %v942, 7
    %945 = vset.pattern.permute.xlu0 %v943
    %946 = vperm.xlu0 %945, %v938
    %v947 = vpop.permute.xlu0 %946
    %v948 = vlaneseq
    %v949 = vshrl.u32 %v948, 7
    %v950 = vadd.s32 %v949, 8
    %951 = vset.pattern.permute.xlu0 %v950
    %952 = vperm.xlu0 %951, %v938
    %v953 = vpop.permute.xlu0 %952
    %v954 = vlaneseq
    %v955 = vshrl.u32 %v954, 7
    %957 = vset.pattern.permute.xlu0 %v955
    %958 = vperm.xlu0 %957, %v939
    %v959 = vpop.permute.xlu0 %958
    %v960 = vlaneseq
    %v961 = vshrl.u32 %v960, 7
    %v962 = vadd.s32 %v961, 8
    %963 = vset.pattern.permute.xlu0 %v962
    %964 = vperm.xlu0 %963, %v939
    %v965 = vpop.permute.xlu0 %964
    %v970 = vadd.f32 %v838, %v947
    %v971 = vadd.f32 %v839, %v953
    %v972 = vadd.f32 %v840, %v959
    %v973 = vadd.f32 %v841, %v965
    %978 = vset.pattern.permute.xlu0 0
    %979 = vperm.xlu0 %978, %v896
    %v980 = vpop.permute.xlu0 %979
    %981 = vset.pattern.permute.xlu0 0
    %982 = vperm.xlu0 %981, %v897
    %v983 = vpop.permute.xlu0 %982
    %984 = vset.pattern.permute.xlu0 0
    %985 = vperm.xlu0 %984, %v898
    %v986 = vpop.permute.xlu0 %985
    %987 = vset.pattern.permute.xlu0 0
    %988 = vperm.xlu0 %987, %v899
    %v989 = vpop.permute.xlu0 %988
    %v990 = vperm.slane %v980, %v354
    %v991 = vperm.slane %v983, %v361
    %v992 = vsel %vm363, %v991, %v990
    %v993 = vperm.slane %v986, %v354
    %v994 = vperm.slane %v989, %v361
    %v995 = vsel %vm363, %v994, %v993
    %v996 = vsel %vm368, %v995, %v992
    %998 = vrot.lane.b32.xlu0 %v996, 16
    %v999 = vpop.permute.xlu0 %998
    %v1000 = vsel %vm371, %v999, %v996
    %1001 = vrot.lane.b32.xlu0 %v1000, 16
    %v1002 = vpop.permute.xlu0 %1001
    %v1003 = vsel %vm371, %v1002, %v996
    %1005 = vrot.lane.b32.xlu0 %v1003, 113
    %v1006 = vpop.permute.xlu0 %1005
    %v1008 = vsel %vm379, %v1006, 0.0
    %v1010 = vperm.slane %v1008, 0
    %v1011 = vlaneseq
    %v1012 = vshrl.u32 %v1011, 7
    %1014 = vset.pattern.permute.xlu0 %v1012
    %1015 = vperm.xlu0 %1014, %v1010
    %v1016 = vpop.permute.xlu0 %1015
    %v1017 = vlaneseq
    %v1018 = vshrl.u32 %v1017, 7
    %v1019 = vadd.s32 %v1018, 8
    %1020 = vset.pattern.permute.xlu0 %v1019
    %1021 = vperm.xlu0 %1020, %v1010
    %v1022 = vpop.permute.xlu0 %1021
    %v1023 = vperm.slane %v1008, 1
    %v1024 = vlaneseq
    %v1025 = vshrl.u32 %v1024, 7
    %1027 = vset.pattern.permute.xlu0 %v1025
    %1028 = vperm.xlu0 %1027, %v1023
    %v1029 = vpop.permute.xlu0 %1028
    %v1030 = vlaneseq
    %v1031 = vshrl.u32 %v1030, 7
    %v1032 = vadd.s32 %v1031, 8
    %1033 = vset.pattern.permute.xlu0 %v1032
    %1034 = vperm.xlu0 %1033, %v1023
    %v1035 = vpop.permute.xlu0 %1034
    %v1040 = vadd.f32 %v933, %v1016
    %v1041 = vadd.f32 %v934, %v1022
    %v1042 = vadd.f32 %v935, %v1029
    %v1043 = vadd.f32 %v936, %v1035
    %1048 = vset.pattern.permute.xlu0 0
    %1049 = vperm.xlu0 %1048, %v970
    %v1050 = vpop.permute.xlu0 %1049
    %1051 = vset.pattern.permute.xlu0 0
    %1052 = vperm.xlu0 %1051, %v971
    %v1053 = vpop.permute.xlu0 %1052
    %1054 = vset.pattern.permute.xlu0 0
    %1055 = vperm.xlu0 %1054, %v972
    %v1056 = vpop.permute.xlu0 %1055
    %1057 = vset.pattern.permute.xlu0 0
    %1058 = vperm.xlu0 %1057, %v973
    %v1059 = vpop.permute.xlu0 %1058
    %v1060 = vperm.slane %v1050, %v354
    %v1061 = vperm.slane %v1053, %v361
    %v1062 = vsel %vm363, %v1061, %v1060
    %v1063 = vperm.slane %v1056, %v354
    %v1064 = vperm.slane %v1059, %v361
    %v1065 = vsel %vm363, %v1064, %v1063
    %v1066 = vsel %vm368, %v1065, %v1062
    %1068 = vrot.lane.b32.xlu0 %v1066, 16
    %v1069 = vpop.permute.xlu0 %1068
    %v1070 = vsel %vm371, %v1069, %v1066
    %1071 = vrot.lane.b32.xlu0 %v1070, 16
    %v1072 = vpop.permute.xlu0 %1071
    %v1073 = vsel %vm371, %v1072, %v1066
    %1075 = vrot.lane.b32.xlu0 %v1073, 127
    %v1076 = vpop.permute.xlu0 %1075
    %v1078 = vsel %vm440, %v1076, 0.0
    %v1080 = vperm.slane %v1078, 0
    %v1081 = vlaneseq
    %v1082 = vshrl.u32 %v1081, 7
    %1084 = vset.pattern.permute.xlu0 %v1082
    %1085 = vperm.xlu0 %1084, %v1080
    %v1086 = vpop.permute.xlu0 %1085
    %v1087 = vlaneseq
    %v1088 = vshrl.u32 %v1087, 7
    %v1089 = vadd.s32 %v1088, 8
    %1090 = vset.pattern.permute.xlu0 %v1089
    %1091 = vperm.xlu0 %1090, %v1080
    %v1092 = vpop.permute.xlu0 %1091
    %v1093 = vperm.slane %v1078, 1
    %v1094 = vlaneseq
    %v1095 = vshrl.u32 %v1094, 7
    %1097 = vset.pattern.permute.xlu0 %v1095
    %1098 = vperm.xlu0 %1097, %v1093
    %v1099 = vpop.permute.xlu0 %1098
    %v1100 = vlaneseq
    %v1101 = vshrl.u32 %v1100, 7
    %v1102 = vadd.s32 %v1101, 8
    %1103 = vset.pattern.permute.xlu0 %v1102
    %1104 = vperm.xlu0 %1103, %v1093
    %v1105 = vpop.permute.xlu0 %1104
    %v1110 = vadd.f32 %v1040, %v1086
    %v1111 = vadd.f32 %v1041, %v1092
    %v1112 = vadd.f32 %v1042, %v1099
    %v1113 = vadd.f32 %v1043, %v1105
    %s1114 = sld [smem:[#allocation7]]
    %v1115 = vstv %s1114
    %v1116 = vmul.f32 %v477, %v1115
    %v1117 = vmul.f32 %v478, %v1115
    %v1118 = vmul.f32 %v479, %v1115
    %v1119 = vmul.f32 %v480, %v1115
    %s1120 = sld [smem:[#allocation7 + $0x1]]
    %v1121 = vstv %s1120
    %v1122 = vadd.f32 %v1116, %v1121
    %v1123 = vadd.f32 %v1117, %v1121
    %v1124 = vadd.f32 %v1118, %v1121
    %v1125 = vadd.f32 %v1119, %v1121
    %v1126 = vxor.u32 %v1122, 2147483648
    %v1127 = vxor.u32 %v1123, 2147483648
    %v1128 = vxor.u32 %v1124, 2147483648
    %v1129 = vxor.u32 %v1125, 2147483648
    %v1130 = vmul.f32 %v1126, 1.442695
    %v1131 = vpow.pop %v1130
    %v1132 = vmul.f32 %v1127, 1.442695
    %v1133 = vpow.pop %v1132
    %v1134 = vmul.f32 %v1128, 1.442695
    %v1135 = vpow.pop %v1134
    %v1136 = vmul.f32 %v1129, 1.442695
    %v1137 = vpow.pop %v1136
    %v1138 = vadd.f32 %v1131, 1.0
    %v1139 = vadd.f32 %v1133, 1.0
    %v1140 = vadd.f32 %v1135, 1.0
    %v1141 = vadd.f32 %v1137, 1.0
    %v1142 = vrcp.pop %v1138
    %v1143 = vmul.f32 %v1138, %v1142
    %v1144 = vsub.f32 1.0, %v1143
    %v1145 = vmul.f32 %v1142, %v1144
    %v1146 = vadd.f32 %v1142, %v1145
    %vm1147 = vweird.f32 %v1138
    %vm1148 = vweird.f32 %v1142
    %vm1149 = vmor %vm1147, %vm1148
    %v1150 = vsel %vm1149, %v1142, %v1146
    %v1151 = vand.u32 2147483647, %v1138
    %vm1152 = vcmp.eq.f32.partialorder %v1151, 8.507059e+37
    %v1153 = vand.u32 %v1138, 2147483648
    %v1154 = vor.u32 1.1754944e-38, %v1153
    %v1155 = vsel %vm1152, %v1154, %v1150
    %v1156 = vmul.f32 1.0, %v1155
    %v1157 = vrcp.pop %v1139
    %v1158 = vmul.f32 %v1139, %v1157
    %v1159 = vsub.f32 1.0, %v1158
    %v1160 = vmul.f32 %v1157, %v1159
    %v1161 = vadd.f32 %v1157, %v1160
    %vm1162 = vweird.f32 %v1139
    %vm1163 = vweird.f32 %v1157
    %vm1164 = vmor %vm1162, %vm1163
    %v1165 = vsel %vm1164, %v1157, %v1161
    %v1166 = vand.u32 2147483647, %v1139
    %vm1167 = vcmp.eq.f32.partialorder %v1166, 8.507059e+37
    %v1168 = vand.u32 %v1139, 2147483648
    %v1169 = vor.u32 1.1754944e-38, %v1168
    %v1170 = vsel %vm1167, %v1169, %v1165
    %v1171 = vmul.f32 1.0, %v1170
    %v1172 = vrcp.pop %v1140
    %v1173 = vmul.f32 %v1140, %v1172
    %v1174 = vsub.f32 1.0, %v1173
    %v1175 = vmul.f32 %v1172, %v1174
    %v1176 = vadd.f32 %v1172, %v1175
    %vm1177 = vweird.f32 %v1140
    %vm1178 = vweird.f32 %v1172
    %vm1179 = vmor %vm1177, %vm1178
    %v1180 = vsel %vm1179, %v1172, %v1176
    %v1181 = vand.u32 2147483647, %v1140
    %vm1182 = vcmp.eq.f32.partialorder %v1181, 8.507059e+37
    %v1183 = vand.u32 %v1140, 2147483648
    %v1184 = vor.u32 1.1754944e-38, %v1183
    %v1185 = vsel %vm1182, %v1184, %v1180
    %v1186 = vmul.f32 1.0, %v1185
    %v1187 = vrcp.pop %v1141
    %v1188 = vmul.f32 %v1141, %v1187
    %v1189 = vsub.f32 1.0, %v1188
    %v1190 = vmul.f32 %v1187, %v1189
    %v1191 = vadd.f32 %v1187, %v1190
    %vm1192 = vweird.f32 %v1141
    %vm1193 = vweird.f32 %v1187
    %vm1194 = vmor %vm1192, %vm1193
    %v1195 = vsel %vm1194, %v1187, %v1191
    %v1196 = vand.u32 2147483647, %v1141
    %vm1197 = vcmp.eq.f32.partialorder %v1196, 8.507059e+37
    %v1198 = vand.u32 %v1141, 2147483648
    %v1199 = vor.u32 1.1754944e-38, %v1198
    %v1200 = vsel %vm1197, %v1199, %v1195
    %v1201 = vmul.f32 1.0, %v1200
    %1206 = vset.pattern.permute.xlu0 0
    %1207 = vperm.xlu0 %1206, %v1156
    %v1208 = vpop.permute.xlu0 %1207
    %1209 = vset.pattern.permute.xlu0 0
    %1210 = vperm.xlu0 %1209, %v1171
    %v1211 = vpop.permute.xlu0 %1210
    %1212 = vset.pattern.permute.xlu0 0
    %1213 = vperm.xlu0 %1212, %v1186
    %v1214 = vpop.permute.xlu0 %1213
    %1215 = vset.pattern.permute.xlu0 0
    %1216 = vperm.xlu0 %1215, %v1201
    %v1217 = vpop.permute.xlu0 %1216
    %v1218 = vperm.slane %v1208, %v354
    %v1219 = vperm.slane %v1211, %v361
    %v1220 = vsel %vm363, %v1219, %v1218
    %v1221 = vperm.slane %v1214, %v354
    %v1222 = vperm.slane %v1217, %v361
    %v1223 = vsel %vm363, %v1222, %v1221
    %v1224 = vsel %vm368, %v1223, %v1220
    %vm1226 = vcmask 123904
    %1227 = vst.msk [vmem:[#allocation8] sm:$0x3] %vm1226, %v1224
    %s1228 = sld [smem:[#allocation7 + $0x80]]
    %v1229 = vstv %s1228
    %v1230 = vmul.f32 %v1110, %v1229
    %v1231 = vmul.f32 %v1111, %v1229
    %v1232 = vmul.f32 %v1112, %v1229
    %v1233 = vmul.f32 %v1113, %v1229
    %s1234 = sld [smem:[#allocation7 + $0x81]]
    %v1235 = vstv %s1234
    %v1236 = vadd.f32 %v1230, %v1235
    %v1237 = vadd.f32 %v1231, %v1235
    %v1238 = vadd.f32 %v1232, %v1235
    %v1239 = vadd.f32 %v1233, %v1235
    %v1240 = vxor.u32 %v1236, 2147483648
    %v1241 = vxor.u32 %v1237, 2147483648
    %v1242 = vxor.u32 %v1238, 2147483648
    %v1243 = vxor.u32 %v1239, 2147483648
    %v1244 = vmul.f32 %v1240, 1.442695
    %v1245 = vpow.pop %v1244
    %v1246 = vmul.f32 %v1241, 1.442695
    %v1247 = vpow.pop %v1246
    %v1248 = vmul.f32 %v1242, 1.442695
    %v1249 = vpow.pop %v1248
    %v1250 = vmul.f32 %v1243, 1.442695
    %v1251 = vpow.pop %v1250
    %v1252 = vadd.f32 %v1245, 1.0
    %v1253 = vadd.f32 %v1247, 1.0
    %v1254 = vadd.f32 %v1249, 1.0
    %v1255 = vadd.f32 %v1251, 1.0
    %v1256 = vrcp.pop %v1252
    %v1257 = vmul.f32 %v1252, %v1256
    %v1258 = vsub.f32 1.0, %v1257
    %v1259 = vmul.f32 %v1256, %v1258
    %v1260 = vadd.f32 %v1256, %v1259
    %vm1261 = vweird.f32 %v1252
    %vm1262 = vweird.f32 %v1256
    %vm1263 = vmor %vm1261, %vm1262
    %v1264 = vsel %vm1263, %v1256, %v1260
    %v1265 = vand.u32 2147483647, %v1252
    %vm1266 = vcmp.eq.f32.partialorder %v1265, 8.507059e+37
    %v1267 = vand.u32 %v1252, 2147483648
    %v1268 = vor.u32 1.1754944e-38, %v1267
    %v1269 = vsel %vm1266, %v1268, %v1264
    %v1270 = vmul.f32 1.0, %v1269
    %v1271 = vrcp.pop %v1253
    %v1272 = vmul.f32 %v1253, %v1271
    %v1273 = vsub.f32 1.0, %v1272
    %v1274 = vmul.f32 %v1271, %v1273
    %v1275 = vadd.f32 %v1271, %v1274
    %vm1276 = vweird.f32 %v1253
    %vm1277 = vweird.f32 %v1271
    %vm1278 = vmor %vm1276, %vm1277
    %v1279 = vsel %vm1278, %v1271, %v1275
    %v1280 = vand.u32 2147483647, %v1253
    %vm1281 = vcmp.eq.f32.partialorder %v1280, 8.507059e+37
    %v1282 = vand.u32 %v1253, 2147483648
    %v1283 = vor.u32 1.1754944e-38, %v1282
    %v1284 = vsel %vm1281, %v1283, %v1279
    %v1285 = vmul.f32 1.0, %v1284
    %v1286 = vrcp.pop %v1254
    %v1287 = vmul.f32 %v1254, %v1286
    %v1288 = vsub.f32 1.0, %v1287
    %v1289 = vmul.f32 %v1286, %v1288
    %v1290 = vadd.f32 %v1286, %v1289
    %vm1291 = vweird.f32 %v1254
    %vm1292 = vweird.f32 %v1286
    %vm1293 = vmor %vm1291, %vm1292
    %v1294 = vsel %vm1293, %v1286, %v1290
    %v1295 = vand.u32 2147483647, %v1254
    %vm1296 = vcmp.eq.f32.partialorder %v1295, 8.507059e+37
    %v1297 = vand.u32 %v1254, 2147483648
    %v1298 = vor.u32 1.1754944e-38, %v1297
    %v1299 = vsel %vm1296, %v1298, %v1294
    %v1300 = vmul.f32 1.0, %v1299
    %v1301 = vrcp.pop %v1255
    %v1302 = vmul.f32 %v1255, %v1301
    %v1303 = vsub.f32 1.0, %v1302
    %v1304 = vmul.f32 %v1301, %v1303
    %v1305 = vadd.f32 %v1301, %v1304
    %vm1306 = vweird.f32 %v1255
    %vm1307 = vweird.f32 %v1301
    %vm1308 = vmor %vm1306, %vm1307
    %v1309 = vsel %vm1308, %v1301, %v1305
    %v1310 = vand.u32 2147483647, %v1255
    %vm1311 = vcmp.eq.f32.partialorder %v1310, 8.507059e+37
    %v1312 = vand.u32 %v1255, 2147483648
    %v1313 = vor.u32 1.1754944e-38, %v1312
    %v1314 = vsel %vm1311, %v1313, %v1309
    %v1315 = vmul.f32 1.0, %v1314
    %1320 = vset.pattern.permute.xlu0 0
    %1321 = vperm.xlu0 %1320, %v1270
    %v1322 = vpop.permute.xlu0 %1321
    %1323 = vset.pattern.permute.xlu0 0
    %1324 = vperm.xlu0 %1323, %v1285
    %v1325 = vpop.permute.xlu0 %1324
    %1326 = vset.pattern.permute.xlu0 0
    %1327 = vperm.xlu0 %1326, %v1300
    %v1328 = vpop.permute.xlu0 %1327
    %1329 = vset.pattern.permute.xlu0 0
    %1330 = vperm.xlu0 %1329, %v1315
    %v1331 = vpop.permute.xlu0 %1330
    %v1332 = vperm.slane %v1322, %v354
    %v1333 = vperm.slane %v1325, %v361
    %v1334 = vsel %vm363, %v1333, %v1332
    %v1335 = vperm.slane %v1328, %v354
    %v1336 = vperm.slane %v1331, %v361
    %v1337 = vsel %vm363, %v1336, %v1335
    %v1338 = vsel %vm368, %v1337, %v1334
    %1340 = vst.msk [vmem:[#allocation9] sm:$0x3] %vm1226, %v1338
    // Predicated region
    $region38: #{tpu_custom_call.1} parent=1 // pred_check
      _
    $region39: #{tpu_custom_call.1} parent=1 // pred_check_branch
      %1342 = sbr.rel (0) target = $region41
    $region40: #{tpu_custom_call.1} parent=1 // pred_region
      %1344 = vsyncadd [#allocation3], 0
      %s1346 = sshll.u32 [#allocation8], 4
      %s1347 = int_to_ptr.vmem [resolvable:$true] %s1346
      %s1348 = sshll.u32 %s6, 4
      %s1349 = int_to_ptr.hbm [resolvable:$true] %s1348
      %1351 = dma.vmem_to_hbm [thread:$0]  %s1347, 32, %s1349, [#allocation3]
    $region41: #{tpu_custom_call.1} parent=1 // pred_fallthru
      _
    // Predicated region
    $region42: #{tpu_custom_call.1} parent=1 // pred_check
      _
    $region43: #{tpu_custom_call.1} parent=1 // pred_check_branch
      %1353 = sbr.rel (0) target = $region45
    $region44: #{tpu_custom_call.1} parent=1 // pred_region
      %1355 = vsyncadd [#allocation10], 0
      %s1357 = sshll.u32 [#allocation9], 4
      %s1358 = int_to_ptr.vmem [resolvable:$true] %s1357
      %s1359 = sshll.u32 %s7, 4
      %s1360 = int_to_ptr.hbm [resolvable:$true] %s1359
      %1362 = dma.vmem_to_hbm [thread:$0]  %s1358, 32, %s1360, [#allocation10]
    $region45: #{tpu_custom_call.1} parent=1 // pred_fallthru
      _
    // Predicated region
    $region46: #{tpu_custom_call.1} parent=1 // pred_check
      _
    $region47: #{tpu_custom_call.1} parent=1 // pred_check_branch
      %1364 = sbr.rel (0) target = $region49
    $region48: #{tpu_custom_call.1} parent=1 // pred_region
      %1366 = dma.done [#allocation3], 32
    $region49: #{tpu_custom_call.1} parent=1 // pred_fallthru
      _
    // Predicated region
    $region50: #{tpu_custom_call.1} parent=1 // pred_check
      _
    $region51: #{tpu_custom_call.1} parent=1 // pred_check_branch
      %1368 = sbr.rel (0) target = $region53
    $region52: #{tpu_custom_call.1} parent=1 // pred_region
      %1370 = dma.done [#allocation10], 32
    $region53: #{tpu_custom_call.1} parent=1 // pred_fallthru
      _
    %1371 = vsyncpa [#allocation3], 1
    %1372 = vsyncpa [#allocation10], 1
    %1373 = vsyncpa [#allocation4], 1
    %1374 = vsyncpa [#allocation6], 1

</llo_original>
